<compile_context>
chip_gen: v6e
topology: v6e:2x2x1
jax: 0.10.0
libtpu: 0.0.40
codegen_flags: <defaults>
</compile_context>

<pallas_src>
import jax
import jax.numpy as jnp
from jax import lax
from jax.experimental import pallas as pl
from jax.experimental.pallas import tpu as pltpu

NUM_CLASSES = 4
PACK_WIDTH = 128      # lane-dense packed output row: [haz(4) | S(4) | yhat(1) | 0-pad]
S_CHUNK = 32          # spatial rows reduced per sub-step of the single-pass pooling


# ----------------------------------------------------------------------------
# Kernel: per-batch-element global avg/max pool + 3-layer MLP + heads.
# ----------------------------------------------------------------------------
def _surv_kernel(x_ref, w1_ref, b1_ref, w2_ref, b2_ref, w3_ref, b3_ref, out_ref):
    # x_ref: (1, S, C) bf16/f32 — spatial on sublanes, channels on lanes.
    S = x_ref.shape[1]
    C = x_ref.shape[2]

    # ---- global AvgPool3d + MaxPool3d: single pass over x, chunked over S ----
    def body(i, carry):
        s_acc, m_acc = carry
        off = pl.multiple_of(i * S_CHUNK, S_CHUNK)
        chunk = x_ref[0, pl.ds(off, S_CHUNK), :].astype(jnp.float32)  # (S_CHUNK, C)
        return s_acc + chunk, jnp.maximum(m_acc, chunk)

    s_acc, m_acc = lax.fori_loop(
        0, S // S_CHUNK, body,
        (jnp.zeros((S_CHUNK, C), jnp.float32),
         jnp.full((S_CHUNK, C), -jnp.inf, jnp.float32)),
        unroll=True)

    avg = jnp.sum(s_acc, axis=0, keepdims=True) * (1.0 / S)   # (1, C)
    mx = jnp.max(m_acc, axis=0, keepdims=True)                # (1, C)

    # ---- MLP: fused cat([avg, max]) @ W1 as a single K=2C matmul -------------
    feat = jnp.concatenate([avg, mx], axis=-1)                # (1, 2C)
    h1 = jnp.dot(feat, w1_ref[...], preferred_element_type=jnp.float32) + b1_ref[...]
    h1 = jnp.maximum(h1, 0.0)                                 # (1, 256)
    # Dropout(p=0.2) -> identity at inference.
    h2 = jnp.dot(h1, w2_ref[...], preferred_element_type=jnp.float32) + b2_ref[...]
    h2 = jnp.maximum(h2, 0.0)                                 # (1, 64)

    # classifier padded to 128 lanes (zero weight cols, -1e30 bias on pad lanes)
    logits = jnp.dot(h2, w3_ref[...], preferred_element_type=jnp.float32) + b3_ref[...]
    # logits: (1, 128); lanes >= NUM_CLASSES hold ~-1e30 and never win the max.

    # ---- heads: sigmoid / cumprod / first-max argmax -------------------------
    haz = jax.nn.sigmoid(logits[:, :NUM_CLASSES])             # (1, 4)
    q = 1.0 - haz
    c0 = q[:, 0:1]
    c1 = c0 * q[:, 1:2]
    c2 = c1 * q[:, 2:3]
    c3 = c2 * q[:, 3:4]
    surv = jnp.concatenate([c0, c1, c2, c3], axis=-1)         # (1, 4)

    mval = jnp.max(logits, axis=-1, keepdims=True)
    col = lax.broadcasted_iota(jnp.int32, logits.shape, 1)
    yhat = jnp.min(jnp.where(logits == mval, col, jnp.int32(1 << 30)),
                   axis=-1, keepdims=True).astype(jnp.float32)  # (1, 1)

    pad = jnp.zeros((1, PACK_WIDTH - 2 * NUM_CLASSES - 1), jnp.float32)
    packed = jnp.concatenate([haz, surv, yhat, pad], axis=-1)   # (1, 128)
    out_ref[...] = packed.reshape(out_ref.shape)


# ----------------------------------------------------------------------------
# Wrapper
# ----------------------------------------------------------------------------
@jax.jit
def surv_forward(x, params):
    """x: (B, C, D, H, W) NCDHW activation (float32 or bfloat16), like x4_1."""
    B, C, D, H, W = x.shape
    S = D * H * W

    # Kernel-preferred layout: spatial on sublanes, channels on lanes.
    # TODO(synk): fuse this head into the producer of x4_1 (or have it emit
    # (B, S, C) bf16 directly) so this transpose / extra HBM round trip and the
    # standalone-call overhead disappear — at these shapes they dominate.
    xs = jnp.transpose(x.reshape(B, C, S), (0, 2, 1))          # (B, S, C)

    w1, b1, w2, b2, w3, b3 = params
    # Pad classifier to a lane-dense 128-wide tile; pad bias with -1e30 so the
    # pad lanes can never be the argmax.
    w3p = jnp.zeros((w3.shape[0], PACK_WIDTH), jnp.float32).at[:, :NUM_CLASSES].set(w3)
    b3p = jnp.full((PACK_WIDTH,), -1e30, jnp.float32).at[:NUM_CLASSES].set(b3)

    ins = (xs, w1, b1[None, :], w2, b2[None, :], w3p, b3p[None, :])

    packed = pl.pallas_call(
        _surv_kernel,
        grid=(B,),
        in_specs=[
            pl.BlockSpec((1, S, C), lambda b: (b, 0, 0)),          # x, per-batch tile
            pl.BlockSpec(w1.shape, lambda b: (0, 0)),              # W1 whole (768,256)
            pl.BlockSpec((1, b1.shape[0]), lambda b: (0, 0)),
            pl.BlockSpec(w2.shape, lambda b: (0, 0)),
            pl.BlockSpec((1, b2.shape[0]), lambda b: (0, 0)),
            pl.BlockSpec((w3.shape[0], PACK_WIDTH), lambda b: (0, 0)),
            pl.BlockSpec((1, PACK_WIDTH), lambda b: (0, 0)),
        ],
        out_specs=pl.BlockSpec((1, 1, PACK_WIDTH), lambda b: (b, 0, 0)),
        out_shape=jax.ShapeDtypeStruct((B, 1, PACK_WIDTH), jnp.float32),
        compiler_params=pltpu.CompilerParams(
            dimension_semantics=("parallel",)),                    # megacore on v7x
    )(*ins)

    packed = packed[:, 0, :]
    hazards = packed[:, 0:NUM_CLASSES]
    Ssurv = packed[:, NUM_CLASSES:2 * NUM_CLASSES]
    yhat = packed[:, 2 * NUM_CLASSES:2 * NUM_CLASSES + 1].astype(jnp.int32)
    return hazards, Ssurv, yhat


# ----------------------------------------------------------------------------
# Deterministic parameter init (PyTorch nn.Linear-style uniform bounds).
# ----------------------------------------------------------------------------
def init_params(key):
    def lin(kw, kb, fan_in, fan_out):
        bound = 1.0 / jnp.sqrt(jnp.float32(fan_in))
        w = jax.random.uniform(kw, (fan_in, fan_out), jnp.float32, -bound, bound)
        b = jax.random.uniform(kb, (fan_out,), jnp.float32, -bound, bound)
        return w, b

    ks = jax.random.split(key, 6)
    w1, b1 = lin(ks[0], ks[1], 768, 256)
    w2, b2 = lin(ks[2], ks[3], 256, 64)
    w3, b3 = lin(ks[4], ks[5], 64, 4)
    return (w1, b1, w2, b2, w3, b3)


# ----------------------------------------------------------------------------
# Pure-JAX reference for correctness checking.
# ----------------------------------------------------------------------------
def reference(x, params):
    B, C = x.shape[0], x.shape[1]
    xs = x.astype(jnp.float32).reshape(B, C, -1)
    feat = jnp.concatenate([xs.mean(-1), xs.max(-1)], axis=1)   # (B, 768)
    w1, b1, w2, b2, w3, b3 = params
    h1 = jax.nn.relu(feat @ w1 + b1)
    h2 = jax.nn.relu(h1 @ w2 + b2)
    logits = h2 @ w3 + b3
    haz = jax.nn.sigmoid(logits)
    Ssurv = jnp.cumprod(1.0 - haz, axis=1)
    yhat = jnp.argmax(logits, axis=1, keepdims=True).astype(jnp.int32)
    return haz, Ssurv, yhat


if __name__ == "__main__":
    key = jax.random.PRNGKey(0)
    kx, kp = jax.random.split(key)

    # Shapes implied by the module: Linear(768) after concat of two 384-channel
    # global pools with kernel (8,8,8)  ->  x4_1: (B, 384, 8, 8, 8).
    B, C, D, H, W = 2, 384, 8, 8, 8
    # bf16 activation (what an upstream conv block would emit) — halves the
    # dominant HBM read; kernel and reference both up-cast to f32 internally.
    x = jax.random.normal(kx, (B, C, D, H, W), jnp.float32).astype(jnp.bfloat16)
    params = init_params(kp)

    hazards, Ssurv, yhat = surv_forward(x, params)
    jax.block_until_ready((hazards, Ssurv, yhat))

    haz_ref, S_ref, yhat_ref = reference(x, params)
    assert jnp.allclose(hazards, haz_ref, atol=1e-4, rtol=1e-4)
    assert jnp.allclose(Ssurv, S_ref, atol=1e-4, rtol=1e-4)
    assert jnp.array_equal(yhat, yhat_ref)

    print("KERNEL_OK")
</pallas_src>

<mosaic_0001>
module attributes {stable_mosaic.version = 11 : i64} {
  func.func @_surv_kernel(%arg0: i32, %arg1: memref<1x512x384xbf16, #tpu.memory_space<vmem>>, %arg2: memref<768x256xf32, #tpu.memory_space<vmem>>, %arg3: memref<1x256xf32, #tpu.memory_space<vmem>>, %arg4: memref<256x64xf32, #tpu.memory_space<vmem>>, %arg5: memref<1x64xf32, #tpu.memory_space<vmem>>, %arg6: memref<64x128xf32, #tpu.memory_space<vmem>>, %arg7: memref<1x128xf32, #tpu.memory_space<vmem>>, %arg8: memref<1x1x128xf32, #tpu.memory_space<vmem>>) attributes {dimension_semantics = [#tpu.dimension_semantics<parallel>], iteration_bounds = array<i64: 2>, scalar_prefetch = 0 : i64, scratch_operands = 0 : i64, tpu.core_type = #tpu.core_type<tc>, window_params = [{transform_indices = @transform_0, window_bounds = array<i64: 1, 512, 384>}, {pipeline_mode = #tpu.pipeline_mode<synchronous>, transform_indices = @transform_1, window_bounds = array<i64: 768, 256>}, {pipeline_mode = #tpu.pipeline_mode<synchronous>, transform_indices = @transform_2, window_bounds = array<i64: 1, 256>}, {pipeline_mode = #tpu.pipeline_mode<synchronous>, transform_indices = @transform_3, window_bounds = array<i64: 256, 64>}, {pipeline_mode = #tpu.pipeline_mode<synchronous>, transform_indices = @transform_4, window_bounds = array<i64: 1, 64>}, {pipeline_mode = #tpu.pipeline_mode<synchronous>, transform_indices = @transform_5, window_bounds = array<i64: 64, 128>}, {pipeline_mode = #tpu.pipeline_mode<synchronous>, transform_indices = @transform_6, window_bounds = array<i64: 1, 128>}, {transform_indices = @transform_7, window_bounds = array<i64: 1, 1, 128>}]} {
    %cst = arith.constant 0.000000e+00 : f32
    %0 = vector.broadcast %cst : f32 to vector<32x384xf32>
    %cst_0 = arith.constant 0xFF800000 : f32
    %1 = vector.broadcast %cst_0 : f32 to vector<32x384xf32>
    %c0_i32 = arith.constant 0 : i32
    %c32_i32 = arith.constant 32 : i32
    %2 = arith.muli %c0_i32, %c32_i32 : i32
    %3 = tpu.assume_multiple %2, 32 : i32
    %c0 = arith.constant 0 : index
    %4 = arith.index_cast %3 : i32 to index
    %c0_1 = arith.constant 0 : index
    %5 = vector.load %arg1[%c0, %4, %c0_1] : memref<1x512x384xbf16, #tpu.memory_space<vmem>>, vector<1x32x384xbf16>
    %6 = vector.shape_cast %5 : vector<1x32x384xbf16> to vector<32x384xbf16>
    %7 = arith.extf %6 : vector<32x384xbf16> to vector<32x384xf32>
    %8 = arith.addf %0, %7 : vector<32x384xf32>
    %9 = arith.maximumf %1, %7 : vector<32x384xf32>
    %c1_i32 = arith.constant 1 : i32
    %c32_i32_2 = arith.constant 32 : i32
    %10 = arith.muli %c1_i32, %c32_i32_2 : i32
    %11 = tpu.assume_multiple %10, 32 : i32
    %c0_3 = arith.constant 0 : index
    %12 = arith.index_cast %11 : i32 to index
    %c0_4 = arith.constant 0 : index
    %13 = vector.load %arg1[%c0_3, %12, %c0_4] : memref<1x512x384xbf16, #tpu.memory_space<vmem>>, vector<1x32x384xbf16>
    %14 = vector.shape_cast %13 : vector<1x32x384xbf16> to vector<32x384xbf16>
    %15 = arith.extf %14 : vector<32x384xbf16> to vector<32x384xf32>
    %16 = arith.addf %8, %15 : vector<32x384xf32>
    %17 = arith.maximumf %9, %15 : vector<32x384xf32>
    %c2_i32 = arith.constant 2 : i32
    %c32_i32_5 = arith.constant 32 : i32
    %18 = arith.muli %c2_i32, %c32_i32_5 : i32
    %19 = tpu.assume_multiple %18, 32 : i32
    %c0_6 = arith.constant 0 : index
    %20 = arith.index_cast %19 : i32 to index
    %c0_7 = arith.constant 0 : index
    %21 = vector.load %arg1[%c0_6, %20, %c0_7] : memref<1x512x384xbf16, #tpu.memory_space<vmem>>, vector<1x32x384xbf16>
    %22 = vector.shape_cast %21 : vector<1x32x384xbf16> to vector<32x384xbf16>
    %23 = arith.extf %22 : vector<32x384xbf16> to vector<32x384xf32>
    %24 = arith.addf %16, %23 : vector<32x384xf32>
    %25 = arith.maximumf %17, %23 : vector<32x384xf32>
    %c3_i32 = arith.constant 3 : i32
    %c32_i32_8 = arith.constant 32 : i32
    %26 = arith.muli %c3_i32, %c32_i32_8 : i32
    %27 = tpu.assume_multiple %26, 32 : i32
    %c0_9 = arith.constant 0 : index
    %28 = arith.index_cast %27 : i32 to index
    %c0_10 = arith.constant 0 : index
    %29 = vector.load %arg1[%c0_9, %28, %c0_10] : memref<1x512x384xbf16, #tpu.memory_space<vmem>>, vector<1x32x384xbf16>
    %30 = vector.shape_cast %29 : vector<1x32x384xbf16> to vector<32x384xbf16>
    %31 = arith.extf %30 : vector<32x384xbf16> to vector<32x384xf32>
    %32 = arith.addf %24, %31 : vector<32x384xf32>
    %33 = arith.maximumf %25, %31 : vector<32x384xf32>
    %c4_i32 = arith.constant 4 : i32
    %c32_i32_11 = arith.constant 32 : i32
    %34 = arith.muli %c4_i32, %c32_i32_11 : i32
    %35 = tpu.assume_multiple %34, 32 : i32
    %c0_12 = arith.constant 0 : index
    %36 = arith.index_cast %35 : i32 to index
    %c0_13 = arith.constant 0 : index
    %37 = vector.load %arg1[%c0_12, %36, %c0_13] : memref<1x512x384xbf16, #tpu.memory_space<vmem>>, vector<1x32x384xbf16>
    %38 = vector.shape_cast %37 : vector<1x32x384xbf16> to vector<32x384xbf16>
    %39 = arith.extf %38 : vector<32x384xbf16> to vector<32x384xf32>
    %40 = arith.addf %32, %39 : vector<32x384xf32>
    %41 = arith.maximumf %33, %39 : vector<32x384xf32>
    %c5_i32 = arith.constant 5 : i32
    %c32_i32_14 = arith.constant 32 : i32
    %42 = arith.muli %c5_i32, %c32_i32_14 : i32
    %43 = tpu.assume_multiple %42, 32 : i32
    %c0_15 = arith.constant 0 : index
    %44 = arith.index_cast %43 : i32 to index
    %c0_16 = arith.constant 0 : index
    %45 = vector.load %arg1[%c0_15, %44, %c0_16] : memref<1x512x384xbf16, #tpu.memory_space<vmem>>, vector<1x32x384xbf16>
    %46 = vector.shape_cast %45 : vector<1x32x384xbf16> to vector<32x384xbf16>
    %47 = arith.extf %46 : vector<32x384xbf16> to vector<32x384xf32>
    %48 = arith.addf %40, %47 : vector<32x384xf32>
    %49 = arith.maximumf %41, %47 : vector<32x384xf32>
    %c6_i32 = arith.constant 6 : i32
    %c32_i32_17 = arith.constant 32 : i32
    %50 = arith.muli %c6_i32, %c32_i32_17 : i32
    %51 = tpu.assume_multiple %50, 32 : i32
    %c0_18 = arith.constant 0 : index
    %52 = arith.index_cast %51 : i32 to index
    %c0_19 = arith.constant 0 : index
    %53 = vector.load %arg1[%c0_18, %52, %c0_19] : memref<1x512x384xbf16, #tpu.memory_space<vmem>>, vector<1x32x384xbf16>
    %54 = vector.shape_cast %53 : vector<1x32x384xbf16> to vector<32x384xbf16>
    %55 = arith.extf %54 : vector<32x384xbf16> to vector<32x384xf32>
    %56 = arith.addf %48, %55 : vector<32x384xf32>
    %57 = arith.maximumf %49, %55 : vector<32x384xf32>
    %c7_i32 = arith.constant 7 : i32
    %c32_i32_20 = arith.constant 32 : i32
    %58 = arith.muli %c7_i32, %c32_i32_20 : i32
    %59 = tpu.assume_multiple %58, 32 : i32
    %c0_21 = arith.constant 0 : index
    %60 = arith.index_cast %59 : i32 to index
    %c0_22 = arith.constant 0 : index
    %61 = vector.load %arg1[%c0_21, %60, %c0_22] : memref<1x512x384xbf16, #tpu.memory_space<vmem>>, vector<1x32x384xbf16>
    %62 = vector.shape_cast %61 : vector<1x32x384xbf16> to vector<32x384xbf16>
    %63 = arith.extf %62 : vector<32x384xbf16> to vector<32x384xf32>
    %64 = arith.addf %56, %63 : vector<32x384xf32>
    %65 = arith.maximumf %57, %63 : vector<32x384xf32>
    %c8_i32 = arith.constant 8 : i32
    %c32_i32_23 = arith.constant 32 : i32
    %66 = arith.muli %c8_i32, %c32_i32_23 : i32
    %67 = tpu.assume_multiple %66, 32 : i32
    %c0_24 = arith.constant 0 : index
    %68 = arith.index_cast %67 : i32 to index
    %c0_25 = arith.constant 0 : index
    %69 = vector.load %arg1[%c0_24, %68, %c0_25] : memref<1x512x384xbf16, #tpu.memory_space<vmem>>, vector<1x32x384xbf16>
    %70 = vector.shape_cast %69 : vector<1x32x384xbf16> to vector<32x384xbf16>
    %71 = arith.extf %70 : vector<32x384xbf16> to vector<32x384xf32>
    %72 = arith.addf %64, %71 : vector<32x384xf32>
    %73 = arith.maximumf %65, %71 : vector<32x384xf32>
    %c9_i32 = arith.constant 9 : i32
    %c32_i32_26 = arith.constant 32 : i32
    %74 = arith.muli %c9_i32, %c32_i32_26 : i32
    %75 = tpu.assume_multiple %74, 32 : i32
    %c0_27 = arith.constant 0 : index
    %76 = arith.index_cast %75 : i32 to index
    %c0_28 = arith.constant 0 : index
    %77 = vector.load %arg1[%c0_27, %76, %c0_28] : memref<1x512x384xbf16, #tpu.memory_space<vmem>>, vector<1x32x384xbf16>
    %78 = vector.shape_cast %77 : vector<1x32x384xbf16> to vector<32x384xbf16>
    %79 = arith.extf %78 : vector<32x384xbf16> to vector<32x384xf32>
    %80 = arith.addf %72, %79 : vector<32x384xf32>
    %81 = arith.maximumf %73, %79 : vector<32x384xf32>
    %c10_i32 = arith.constant 10 : i32
    %c32_i32_29 = arith.constant 32 : i32
    %82 = arith.muli %c10_i32, %c32_i32_29 : i32
    %83 = tpu.assume_multiple %82, 32 : i32
    %c0_30 = arith.constant 0 : index
    %84 = arith.index_cast %83 : i32 to index
    %c0_31 = arith.constant 0 : index
    %85 = vector.load %arg1[%c0_30, %84, %c0_31] : memref<1x512x384xbf16, #tpu.memory_space<vmem>>, vector<1x32x384xbf16>
    %86 = vector.shape_cast %85 : vector<1x32x384xbf16> to vector<32x384xbf16>
    %87 = arith.extf %86 : vector<32x384xbf16> to vector<32x384xf32>
    %88 = arith.addf %80, %87 : vector<32x384xf32>
    %89 = arith.maximumf %81, %87 : vector<32x384xf32>
    %c11_i32 = arith.constant 11 : i32
    %c32_i32_32 = arith.constant 32 : i32
    %90 = arith.muli %c11_i32, %c32_i32_32 : i32
    %91 = tpu.assume_multiple %90, 32 : i32
    %c0_33 = arith.constant 0 : index
    %92 = arith.index_cast %91 : i32 to index
    %c0_34 = arith.constant 0 : index
    %93 = vector.load %arg1[%c0_33, %92, %c0_34] : memref<1x512x384xbf16, #tpu.memory_space<vmem>>, vector<1x32x384xbf16>
    %94 = vector.shape_cast %93 : vector<1x32x384xbf16> to vector<32x384xbf16>
    %95 = arith.extf %94 : vector<32x384xbf16> to vector<32x384xf32>
    %96 = arith.addf %88, %95 : vector<32x384xf32>
    %97 = arith.maximumf %89, %95 : vector<32x384xf32>
    %c12_i32 = arith.constant 12 : i32
    %c32_i32_35 = arith.constant 32 : i32
    %98 = arith.muli %c12_i32, %c32_i32_35 : i32
    %99 = tpu.assume_multiple %98, 32 : i32
    %c0_36 = arith.constant 0 : index
    %100 = arith.index_cast %99 : i32 to index
    %c0_37 = arith.constant 0 : index
    %101 = vector.load %arg1[%c0_36, %100, %c0_37] : memref<1x512x384xbf16, #tpu.memory_space<vmem>>, vector<1x32x384xbf16>
    %102 = vector.shape_cast %101 : vector<1x32x384xbf16> to vector<32x384xbf16>
    %103 = arith.extf %102 : vector<32x384xbf16> to vector<32x384xf32>
    %104 = arith.addf %96, %103 : vector<32x384xf32>
    %105 = arith.maximumf %97, %103 : vector<32x384xf32>
    %c13_i32 = arith.constant 13 : i32
    %c32_i32_38 = arith.constant 32 : i32
    %106 = arith.muli %c13_i32, %c32_i32_38 : i32
    %107 = tpu.assume_multiple %106, 32 : i32
    %c0_39 = arith.constant 0 : index
    %108 = arith.index_cast %107 : i32 to index
    %c0_40 = arith.constant 0 : index
    %109 = vector.load %arg1[%c0_39, %108, %c0_40] : memref<1x512x384xbf16, #tpu.memory_space<vmem>>, vector<1x32x384xbf16>
    %110 = vector.shape_cast %109 : vector<1x32x384xbf16> to vector<32x384xbf16>
    %111 = arith.extf %110 : vector<32x384xbf16> to vector<32x384xf32>
    %112 = arith.addf %104, %111 : vector<32x384xf32>
    %113 = arith.maximumf %105, %111 : vector<32x384xf32>
    %c14_i32 = arith.constant 14 : i32
    %c32_i32_41 = arith.constant 32 : i32
    %114 = arith.muli %c14_i32, %c32_i32_41 : i32
    %115 = tpu.assume_multiple %114, 32 : i32
    %c0_42 = arith.constant 0 : index
    %116 = arith.index_cast %115 : i32 to index
    %c0_43 = arith.constant 0 : index
    %117 = vector.load %arg1[%c0_42, %116, %c0_43] : memref<1x512x384xbf16, #tpu.memory_space<vmem>>, vector<1x32x384xbf16>
    %118 = vector.shape_cast %117 : vector<1x32x384xbf16> to vector<32x384xbf16>
    %119 = arith.extf %118 : vector<32x384xbf16> to vector<32x384xf32>
    %120 = arith.addf %112, %119 : vector<32x384xf32>
    %121 = arith.maximumf %113, %119 : vector<32x384xf32>
    %c15_i32 = arith.constant 15 : i32
    %c32_i32_44 = arith.constant 32 : i32
    %122 = arith.muli %c15_i32, %c32_i32_44 : i32
    %123 = tpu.assume_multiple %122, 32 : i32
    %c0_45 = arith.constant 0 : index
    %124 = arith.index_cast %123 : i32 to index
    %c0_46 = arith.constant 0 : index
    %125 = vector.load %arg1[%c0_45, %124, %c0_46] : memref<1x512x384xbf16, #tpu.memory_space<vmem>>, vector<1x32x384xbf16>
    %126 = vector.shape_cast %125 : vector<1x32x384xbf16> to vector<32x384xbf16>
    %127 = arith.extf %126 : vector<32x384xbf16> to vector<32x384xf32>
    %128 = arith.addf %120, %127 : vector<32x384xf32>
    %129 = arith.maximumf %121, %127 : vector<32x384xf32>
    %c16_i32 = arith.constant 16 : i32
    %cst_47 = arith.constant dense<0.000000e+00> : vector<384xf32>
    %130 = vector.multi_reduction <add>, %128, %cst_47 [0] : vector<32x384xf32> to vector<384xf32>
    %131 = vector.shape_cast %130 : vector<384xf32> to vector<1x384xf32>
    %cst_48 = arith.constant 0.001953125 : f32
    %132 = vector.broadcast %cst_48 : f32 to vector<1x384xf32>
    %133 = arith.mulf %131, %132 : vector<1x384xf32>
    %cst_49 = arith.constant dense<0xFF800000> : vector<384xf32>
    %134 = vector.multi_reduction <maximumf>, %129, %cst_49 [0] : vector<32x384xf32> to vector<384xf32>
    %135 = vector.shape_cast %134 : vector<384xf32> to vector<1x384xf32>
    %136 = tpu.concatenate %133, %135 in 1 : vector<1x384xf32>, vector<1x384xf32> -> vector<1x768xf32>
    %c0_50 = arith.constant 0 : index
    %c0_51 = arith.constant 0 : index
    %137 = vector.load %arg2[%c0_50, %c0_51] : memref<768x256xf32, #tpu.memory_space<vmem>>, vector<768x256xf32>
    %cst_52 = arith.constant dense<0.000000e+00> : vector<1x256xf32>
    %138 = tpu.matmul %136, %137, %cst_52 {dimension_numbers = #tpu.dot_dimension_numbers<[1], [0], [0], [1], [0, 0, 1, 1], [], []>} : vector<1x768xf32>, vector<768x256xf32>, vector<1x256xf32> -> vector<1x256xf32>
    %c0_53 = arith.constant 0 : index
    %c0_54 = arith.constant 0 : index
    %139 = vector.load %arg3[%c0_53, %c0_54] : memref<1x256xf32, #tpu.memory_space<vmem>>, vector<1x256xf32>
    %140 = arith.addf %138, %139 : vector<1x256xf32>
    %cst_55 = arith.constant 0.000000e+00 : f32
    %141 = vector.broadcast %cst_55 : f32 to vector<1x256xf32>
    %142 = arith.maximumf %140, %141 : vector<1x256xf32>
    %c0_56 = arith.constant 0 : index
    %c0_57 = arith.constant 0 : index
    %143 = vector.load %arg4[%c0_56, %c0_57] : memref<256x64xf32, #tpu.memory_space<vmem>>, vector<256x64xf32>
    %cst_58 = arith.constant dense<0.000000e+00> : vector<1x64xf32>
    %144 = tpu.matmul %142, %143, %cst_58 {dimension_numbers = #tpu.dot_dimension_numbers<[1], [0], [0], [1], [0, 0, 1, 1], [], []>} : vector<1x256xf32>, vector<256x64xf32>, vector<1x64xf32> -> vector<1x64xf32>
    %c0_59 = arith.constant 0 : index
    %c0_60 = arith.constant 0 : index
    %145 = vector.load %arg5[%c0_59, %c0_60] : memref<1x64xf32, #tpu.memory_space<vmem>>, vector<1x64xf32>
    %146 = arith.addf %144, %145 : vector<1x64xf32>
    %cst_61 = arith.constant 0.000000e+00 : f32
    %147 = vector.broadcast %cst_61 : f32 to vector<1x64xf32>
    %148 = arith.maximumf %146, %147 : vector<1x64xf32>
    %c0_62 = arith.constant 0 : index
    %c0_63 = arith.constant 0 : index
    %149 = vector.load %arg6[%c0_62, %c0_63] : memref<64x128xf32, #tpu.memory_space<vmem>>, vector<64x128xf32>
    %cst_64 = arith.constant dense<0.000000e+00> : vector<1x128xf32>
    %150 = tpu.matmul %148, %149, %cst_64 {dimension_numbers = #tpu.dot_dimension_numbers<[1], [0], [0], [1], [0, 0, 1, 1], [], []>} : vector<1x64xf32>, vector<64x128xf32>, vector<1x128xf32> -> vector<1x128xf32>
    %c0_65 = arith.constant 0 : index
    %c0_66 = arith.constant 0 : index
    %151 = vector.load %arg7[%c0_65, %c0_66] : memref<1x128xf32, #tpu.memory_space<vmem>>, vector<1x128xf32>
    %152 = arith.addf %150, %151 : vector<1x128xf32>
    %153 = vector.extract_strided_slice %152 {offsets = [0, 0], sizes = [1, 4], strides = [1, 1]} : vector<1x128xf32> to vector<1x4xf32>
    %154 = arith.negf %153 : vector<1x4xf32>
    %155 = math.exp %154 : vector<1x4xf32>
    %cst_67 = arith.constant 1.000000e+00 : f32
    %156 = vector.broadcast %cst_67 : f32 to vector<1x4xf32>
    %157 = arith.addf %156, %155 : vector<1x4xf32>
    %158 = arith.divf %156, %157 : vector<1x4xf32>
    %cst_68 = arith.constant 1.000000e+00 : f32
    %159 = vector.broadcast %cst_68 : f32 to vector<1x4xf32>
    %160 = arith.subf %159, %158 : vector<1x4xf32>
    %161 = vector.extract_strided_slice %160 {offsets = [0, 0], sizes = [1, 1], strides = [1, 1]} : vector<1x4xf32> to vector<1x1xf32>
    %162 = vector.extract_strided_slice %160 {offsets = [0, 1], sizes = [1, 1], strides = [1, 1]} : vector<1x4xf32> to vector<1x1xf32>
    %163 = arith.mulf %161, %162 : vector<1x1xf32>
    %164 = vector.extract_strided_slice %160 {offsets = [0, 2], sizes = [1, 1], strides = [1, 1]} : vector<1x4xf32> to vector<1x1xf32>
    %165 = arith.mulf %163, %164 : vector<1x1xf32>
    %166 = vector.extract_strided_slice %160 {offsets = [0, 3], sizes = [1, 1], strides = [1, 1]} : vector<1x4xf32> to vector<1x1xf32>
    %167 = arith.mulf %165, %166 : vector<1x1xf32>
    %168 = tpu.concatenate %161, %163, %165, %167 in 1 : vector<1x1xf32>, vector<1x1xf32>, vector<1x1xf32>, vector<1x1xf32> -> vector<1x4xf32>
    %cst_69 = arith.constant dense<0xFF800000> : vector<1xf32>
    %169 = vector.multi_reduction <maximumf>, %152, %cst_69 [1] : vector<1x128xf32> to vector<1xf32>
    %170 = vector.shape_cast %169 : vector<1xf32> to vector<1x1xf32>
    %171 = tpu.iota {dimensions = array<i32: 1>} : vector<1x128xi32>
    %172 = vector.broadcast %170 : vector<1x1xf32> to vector<1x128xf32>
    %173 = arith.cmpf oeq, %152, %172 : vector<1x128xf32>
    %c1073741824_i32 = arith.constant 1073741824 : i32
    %174 = vector.broadcast %c1073741824_i32 : i32 to vector<1x128xi32>
    %175 = arith.select %173, %171, %174 : vector<1x128xi1>, vector<1x128xi32>
    %cst_70 = arith.constant dense<2147483647> : vector<1xi32>
    %176 = vector.multi_reduction <minsi>, %175, %cst_70 [1] : vector<1x128xi32> to vector<1xi32>
    %177 = vector.shape_cast %176 : vector<1xi32> to vector<1x1xi32>
    %178 = arith.sitofp %177 : vector<1x1xi32> to vector<1x1xf32>
    %cst_71 = arith.constant 0.000000e+00 : f32
    %179 = vector.broadcast %cst_71 : f32 to vector<1x119xf32>
    %180 = tpu.concatenate %158, %168, %178, %179 in 1 : vector<1x4xf32>, vector<1x4xf32>, vector<1x1xf32>, vector<1x119xf32> -> vector<1x128xf32>
    %181 = vector.shape_cast %180 : vector<1x128xf32> to vector<1x1x128xf32>
    %c0_72 = arith.constant 0 : index
    %c0_73 = arith.constant 0 : index
    %c0_74 = arith.constant 0 : index
    %182 = vector.load %arg8[%c0_72, %c0_73, %c0_74] : memref<1x1x128xf32, #tpu.memory_space<vmem>>, vector<1x1x128xf32>
    tpu.vector_store %arg8[%c0_72, %c0_73, %c0_74], %181 {strides = array<i32>} : memref<1x1x128xf32, #tpu.memory_space<vmem>>, vector<1x1x128xf32>,
    return
  }
  func.func @transform_0(%arg0: i32) -> (i32, i32, i32) {
    %c0_i32 = arith.constant 0 : i32
    %c0_i32_0 = arith.constant 0 : i32
    %c0_i32_1 = arith.constant 0 : i32
    return %arg0, %c0_i32, %c0_i32_0 : i32, i32, i32
  }
  func.func @transform_1(%arg0: i32) -> (i32, i32) {
    %c0_i32 = arith.constant 0 : i32
    %c0_i32_0 = arith.constant 0 : i32
    %c0_i32_1 = arith.constant 0 : i32
    return %c0_i32, %c0_i32_0 : i32, i32
  }
  func.func @transform_2(%arg0: i32) -> (i32, i32) {
    %c0_i32 = arith.constant 0 : i32
    %c0_i32_0 = arith.constant 0 : i32
    %c0_i32_1 = arith.constant 0 : i32
    return %c0_i32, %c0_i32_0 : i32, i32
  }
  func.func @transform_3(%arg0: i32) -> (i32, i32) {
    %c0_i32 = arith.constant 0 : i32
    %c0_i32_0 = arith.constant 0 : i32
    %c0_i32_1 = arith.constant 0 : i32
    return %c0_i32, %c0_i32_0 : i32, i32
  }
  func.func @transform_4(%arg0: i32) -> (i32, i32) {
    %c0_i32 = arith.constant 0 : i32
    %c0_i32_0 = arith.constant 0 : i32
    %c0_i32_1 = arith.constant 0 : i32
    return %c0_i32, %c0_i32_0 : i32, i32
  }
  func.func @transform_5(%arg0: i32) -> (i32, i32) {
    %c0_i32 = arith.constant 0 : i32
    %c0_i32_0 = arith.constant 0 : i32
    %c0_i32_1 = arith.constant 0 : i32
    return %c0_i32, %c0_i32_0 : i32, i32
  }
  func.func @transform_6(%arg0: i32) -> (i32, i32) {
    %c0_i32 = arith.constant 0 : i32
    %c0_i32_0 = arith.constant 0 : i32
    %c0_i32_1 = arith.constant 0 : i32
    return %c0_i32, %c0_i32_0 : i32, i32
  }
  func.func @transform_7(%arg0: i32) -> (i32, i32, i32) {
    %c0_i32 = arith.constant 0 : i32
    %c0_i32_0 = arith.constant 0 : i32
    %c0_i32_1 = arith.constant 0 : i32
    return %arg0, %c0_i32, %c0_i32_0 : i32, i32, i32
  }
}

</mosaic_0001>

<llo_original>
// kernel: surv_forward.1
$region0: #{surv_forward.1}
  #allocation0 [shape = 'u32[]', space=smem, size = 0x4, offset = 0x4, fixed_abs, tag = 'smem constant byte address 0x4 - core index']
  #allocation1 [shape = 'u32[144,128]{1,0:T(1,128)}', space=vmem, size = 0x12000, scoped, tag = 'internal scratch']
  %s0 = inlined_call_operand.hbm [shape: bf16[2,512,384], index: 0, kind: input, shape index: {}]
  %s1 = inlined_call_operand.hbm [shape: f32[768,256], index: 1, kind: input, shape index: {}]
  %s2 = inlined_call_operand.vmem [shape: f32[1,256], index: 2, kind: input, shape index: {}]
  %s3 = inlined_call_operand.vmem [shape: f32[256,64], index: 3, kind: input, shape index: {}]
  %s4 = inlined_call_operand.vmem [shape: f32[1,64], index: 4, kind: input, shape index: {}]
  %s5 = inlined_call_operand.vmem [shape: f32[64,128], index: 5, kind: input, shape index: {}]
  %s6 = inlined_call_operand.vmem [shape: f32[1,128], index: 6, kind: input, shape index: {}]
  %s7 = inlined_call_operand.vmem [shape: f32[2,1,128], index: 7, kind: output, shape index: {}]
  %s8 = sld [smem:[#allocation0]]
  $region69: #{surv_forward.1} parent=0
    _
  %s10 = ssub.s32 1, %s8
  %s11 = scalar_select 0, %s10, %s8
  $region1: #{surv_forward.1} parent=0
    #allocation2 [shape = 'u8[786432]{0}', space=vmem, size = 0xc0000, scoped, tag = 'input window, operand 0']
    #allocation3 [shape = 's32[2]{0}', space=sflag, size = 0x8, scoped, tag = 'scoped memory for surv_forward.1']
    #allocation4 [shape = 'u8[786432]{0}', space=vmem, size = 0xc0000, scoped, tag = 'input window, operand 1, single buffered']
    #allocation5 [shape = 's32[1]{0}', space=sflag, size = 0x4, scoped, tag = 'scoped memory for surv_forward.1']
    %12 = vsyncpa [#allocation3], 0
    %s13 = scalar_lea.sflag [#allocation3], 1
    %14 = vsyncpa %s13, 0
    %15 = vsyncpa [#allocation5], 0
    loop: start=0, step=1, limit=4
    $region2: #{surv_forward.1} parent=1 // loop_pre_header
      _
    $region3: #{surv_forward.1} parent=1 // loop_header
      %s17 = sphi 0, %s21
      %p18 = scmp.ge.s32.totalorder %s17, 4
      %s27 = sphi 0, %s29
      %s30 = sphi 0, %s27
      %s31 = sphi 0, %s30
      %s47 = sphi 0, %s31
      %s51 = sphi 0, %s51
      %s53 = sphi 0, %s51
      %s54 = sphi 0, %s53
      %s68 = sphi 0, %s54
      %s72 = sphi 0, %s72
      %s74 = sphi 0, %s72
      %s75 = sphi 0, %s74
      %s89 = sphi 0, %s75
      %s93 = sphi 0, %s93
      %s95 = sphi 0, %s93
      %s96 = sphi 0, %s95
      %s110 = sphi 0, %s96
      %s114 = sphi 0, %s114
      %s116 = sphi 0, %s114
      %s117 = sphi 0, %s116
      %s131 = sphi 0, %s117
      %s135 = sphi 0, %s135
      %s137 = sphi 0, %s135
      %s138 = sphi 0, %s137
      %s152 = sphi 0, %s138
      %s156 = sphi 0, %s156
      %s158 = sphi 0, %s156
      %s159 = sphi 0, %s158
      %s173 = sphi 0, %s159
      %s179 = sphi 0, %s181
      %s182 = sphi 0, %s179
      %s183 = sphi 0, %s182
      %s199 = sphi 0, %s183
    $region4: #{surv_forward.1} parent=1 // loop_header_branch
      %20 = sbr.rel (%p18) target = $region8
    $region5: #{surv_forward.1} parent=1 // loop_body
      %s22 = ssub.s32 %s17, 1
      %s23 = ssub.s32 %s17, 2
      %s24 = sadd.s32 %s17, 1
      %s25 = ssub.s32 %s17, %s24
      %p26 = scmp.eq.s32.totalorder %s25, 0
      %s28 = sadd.s32 %s27, 1
      %s29 = scalar_select %p26, %s27, %s28
      %p32 = pneg %p26
      %p33 = scmp.eq.s32.totalorder %s17, 1
      %p34 = por %p32, %p33
      %p35 = scmp.ne.s32.totalorder %s27, %s30
      %p36 = scmp.eq.s32.totalorder %s17, 0
      %p37 = por %p35, %p36
      %p38 = scmp.ne.s32.totalorder %s27, %s30
      %p39 = scmp.eq.s32.totalorder %s22, 1
      %p40 = por %p38, %p39
      %p41 = scmp.ne.s32.totalorder %s30, %s31
      %p42 = scmp.eq.s32.totalorder %s22, 0
      %p43 = por %p41, %p42
      %p44 = scmp.ne.s32.totalorder %s30, %s31
      %p45 = scmp.eq.s32.totalorder %s23, 1
      %p46 = por %p44, %p45
      %p48 = scmp.ne.s32.totalorder %s31, %s47
      %p49 = scmp.eq.s32.totalorder %s23, 0
      %p50 = por %p48, %p49
      %s52 = sadd.s32 %s51, 1
      %p55 = scmp.eq.s32.totalorder %s17, 1
      %p56 = scmp.ne.s32.totalorder %s51, %s53
      %p57 = scmp.eq.s32.totalorder %s17, 0
      %p58 = por %p56, %p57
      %p59 = scmp.ne.s32.totalorder %s51, %s53
      %p60 = scmp.eq.s32.totalorder %s22, 1
      %p61 = por %p59, %p60
      %p62 = scmp.ne.s32.totalorder %s53, %s54
      %p63 = scmp.eq.s32.totalorder %s22, 0
      %p64 = por %p62, %p63
      %p65 = scmp.ne.s32.totalorder %s53, %s54
      %p66 = scmp.eq.s32.totalorder %s23, 1
      %p67 = por %p65, %p66
      %p69 = scmp.ne.s32.totalorder %s54, %s68
      %p70 = scmp.eq.s32.totalorder %s23, 0
      %p71 = por %p69, %p70
      %s73 = sadd.s32 %s72, 1
      %p76 = scmp.eq.s32.totalorder %s17, 1
      %p77 = scmp.ne.s32.totalorder %s72, %s74
      %p78 = scmp.eq.s32.totalorder %s17, 0
      %p79 = por %p77, %p78
      %p80 = scmp.ne.s32.totalorder %s72, %s74
      %p81 = scmp.eq.s32.totalorder %s22, 1
      %p82 = por %p80, %p81
      %p83 = scmp.ne.s32.totalorder %s74, %s75
      %p84 = scmp.eq.s32.totalorder %s22, 0
      %p85 = por %p83, %p84
      %p86 = scmp.ne.s32.totalorder %s74, %s75
      %p87 = scmp.eq.s32.totalorder %s23, 1
      %p88 = por %p86, %p87
      %p90 = scmp.ne.s32.totalorder %s75, %s89
      %p91 = scmp.eq.s32.totalorder %s23, 0
      %p92 = por %p90, %p91
      %s94 = sadd.s32 %s93, 1
      %p97 = scmp.eq.s32.totalorder %s17, 1
      %p98 = scmp.ne.s32.totalorder %s93, %s95
      %p99 = scmp.eq.s32.totalorder %s17, 0
      %p100 = por %p98, %p99
      %p101 = scmp.ne.s32.totalorder %s93, %s95
      %p102 = scmp.eq.s32.totalorder %s22, 1
      %p103 = por %p101, %p102
      %p104 = scmp.ne.s32.totalorder %s95, %s96
      %p105 = scmp.eq.s32.totalorder %s22, 0
      %p106 = por %p104, %p105
      %p107 = scmp.ne.s32.totalorder %s95, %s96
      %p108 = scmp.eq.s32.totalorder %s23, 1
      %p109 = por %p107, %p108
      %p111 = scmp.ne.s32.totalorder %s96, %s110
      %p112 = scmp.eq.s32.totalorder %s23, 0
      %p113 = por %p111, %p112
      %s115 = sadd.s32 %s114, 1
      %p118 = scmp.eq.s32.totalorder %s17, 1
      %p119 = scmp.ne.s32.totalorder %s114, %s116
      %p120 = scmp.eq.s32.totalorder %s17, 0
      %p121 = por %p119, %p120
      %p122 = scmp.ne.s32.totalorder %s114, %s116
      %p123 = scmp.eq.s32.totalorder %s22, 1
      %p124 = por %p122, %p123
      %p125 = scmp.ne.s32.totalorder %s116, %s117
      %p126 = scmp.eq.s32.totalorder %s22, 0
      %p127 = por %p125, %p126
      %p128 = scmp.ne.s32.totalorder %s116, %s117
      %p129 = scmp.eq.s32.totalorder %s23, 1
      %p130 = por %p128, %p129
      %p132 = scmp.ne.s32.totalorder %s117, %s131
      %p133 = scmp.eq.s32.totalorder %s23, 0
      %p134 = por %p132, %p133
      %s136 = sadd.s32 %s135, 1
      %p139 = scmp.eq.s32.totalorder %s17, 1
      %p140 = scmp.ne.s32.totalorder %s135, %s137
      %p141 = scmp.eq.s32.totalorder %s17, 0
      %p142 = por %p140, %p141
      %p143 = scmp.ne.s32.totalorder %s135, %s137
      %p144 = scmp.eq.s32.totalorder %s22, 1
      %p145 = por %p143, %p144
      %p146 = scmp.ne.s32.totalorder %s137, %s138
      %p147 = scmp.eq.s32.totalorder %s22, 0
      %p148 = por %p146, %p147
      %p149 = scmp.ne.s32.totalorder %s137, %s138
      %p150 = scmp.eq.s32.totalorder %s23, 1
      %p151 = por %p149, %p150
      %p153 = scmp.ne.s32.totalorder %s138, %s152
      %p154 = scmp.eq.s32.totalorder %s23, 0
      %p155 = por %p153, %p154
      %s157 = sadd.s32 %s156, 1
      %p160 = scmp.eq.s32.totalorder %s17, 1
      %p161 = scmp.ne.s32.totalorder %s156, %s158
      %p162 = scmp.eq.s32.totalorder %s17, 0
      %p163 = por %p161, %p162
      %p164 = scmp.ne.s32.totalorder %s156, %s158
      %p165 = scmp.eq.s32.totalorder %s22, 1
      %p166 = por %p164, %p165
      %p167 = scmp.ne.s32.totalorder %s158, %s159
      %p168 = scmp.eq.s32.totalorder %s22, 0
      %p169 = por %p167, %p168
      %p170 = scmp.ne.s32.totalorder %s158, %s159
      %p171 = scmp.eq.s32.totalorder %s23, 1
      %p172 = por %p170, %p171
      %p174 = scmp.ne.s32.totalorder %s159, %s173
      %p175 = scmp.eq.s32.totalorder %s23, 0
      %p176 = por %p174, %p175
      %s177 = ssub.s32 %s17, %s24
      %p178 = scmp.eq.s32.totalorder %s177, 0
      %s180 = sadd.s32 %s179, 1
      %s181 = scalar_select %p178, %s179, %s180
      %p184 = pneg %p178
      %p185 = scmp.eq.s32.totalorder %s17, 1
      %p186 = por %p184, %p185
      %p187 = scmp.ne.s32.totalorder %s179, %s182
      %p188 = scmp.eq.s32.totalorder %s17, 0
      %p189 = por %p187, %p188
      %p190 = scmp.ne.s32.totalorder %s179, %s182
      %p191 = scmp.eq.s32.totalorder %s22, 1
      %p192 = por %p190, %p191
      %p193 = scmp.ne.s32.totalorder %s182, %s183
      %p194 = scmp.eq.s32.totalorder %s22, 0
      %p195 = por %p193, %p194
      %p196 = scmp.ne.s32.totalorder %s182, %s183
      %p197 = scmp.eq.s32.totalorder %s23, 1
      %p198 = por %p196, %p197
      %p200 = scmp.ne.s32.totalorder %s183, %s199
      %p201 = scmp.eq.s32.totalorder %s23, 0
      %p202 = por %p200, %p201
      %p203 = scmp.le.s32.totalorder 1, %s17
      %p204 = scmp.lt.s32.totalorder %s17, 3
      %p205 = pnand %p203, %p204
      %p206 = pneg %p205
      // Predicated region
      $region9: #{surv_forward.1} parent=5 // pred_check
        _
      $region10: #{surv_forward.1} parent=5 // pred_check_branch
        %208 = sbr.rel (%p205) target = $region12
      $region11: #{surv_forward.1} parent=5 // pred_region
        %s209 = ssub.s32 %s17, 1
        // Predicated region
        $region13: #{surv_forward.1} parent=11 // pred_check
          %p210 = pneg %p64
        $region14: #{surv_forward.1} parent=11 // pred_check_branch
          %212 = sbr.rel (%p210) target = $region16
        $region15: #{surv_forward.1} parent=11 // pred_region
          %s214 = ssub.s32 24576, 24576
          %215 = vsyncadd [#allocation5], %s214
          %s216 = sshll.u32 [#allocation4], 4
          %s217 = int_to_ptr.vmem [resolvable:$true] %s216
          %222 = dma.hbm_to_vmem [thread:$0]  %s1, 24576, %s217, [#allocation5], 256, 256, 16
        $region16: #{surv_forward.1} parent=11 // pred_fallthru
          _
        // Predicated region
        $region17: #{surv_forward.1} parent=11 // pred_check
          %p223 = pneg %p85
        $region18: #{surv_forward.1} parent=11 // pred_check_branch
          %225 = sbr.rel (%p223) target = $region20
        $region19: #{surv_forward.1} parent=11 // pred_region
          _
        $region20: #{surv_forward.1} parent=11 // pred_fallthru
          _
        // Predicated region
        $region21: #{surv_forward.1} parent=11 // pred_check
          %p226 = pneg %p106
        $region22: #{surv_forward.1} parent=11 // pred_check_branch
          %228 = sbr.rel (%p226) target = $region24
        $region23: #{surv_forward.1} parent=11 // pred_region
          _
        $region24: #{surv_forward.1} parent=11 // pred_fallthru
          _
        // Predicated region
        $region25: #{surv_forward.1} parent=11 // pred_check
          %p229 = pneg %p127
        $region26: #{surv_forward.1} parent=11 // pred_check_branch
          %231 = sbr.rel (%p229) target = $region28
        $region27: #{surv_forward.1} parent=11 // pred_region
          _
        $region28: #{surv_forward.1} parent=11 // pred_fallthru
          _
        // Predicated region
        $region29: #{surv_forward.1} parent=11 // pred_check
          %p232 = pneg %p148
        $region30: #{surv_forward.1} parent=11 // pred_check_branch
          %234 = sbr.rel (%p232) target = $region32
        $region31: #{surv_forward.1} parent=11 // pred_region
          _
        $region32: #{surv_forward.1} parent=11 // pred_fallthru
          _
        // Predicated region
        $region33: #{surv_forward.1} parent=11 // pred_check
          %p235 = pneg %p169
        $region34: #{surv_forward.1} parent=11 // pred_check_branch
          %237 = sbr.rel (%p235) target = $region36
        $region35: #{surv_forward.1} parent=11 // pred_region
          _
        $region36: #{surv_forward.1} parent=11 // pred_fallthru
          _
      $region12: #{surv_forward.1} parent=5 // pred_fallthru
        _
      %p238 = scmp.lt.s32.totalorder %s17, 2
      // Predicated region
      $region37: #{surv_forward.1} parent=5 // pred_check
        %p239 = pneg %p238
      $region38: #{surv_forward.1} parent=5 // pred_check_branch
        %241 = sbr.rel (%p239) target = $region40
      $region39: #{surv_forward.1} parent=5 // pred_region
        // Predicated region
        $region41: #{surv_forward.1} parent=39 // pred_check
          %p242 = pneg %p37
        $region42: #{surv_forward.1} parent=39 // pred_check_branch
          %244 = sbr.rel (%p242) target = $region44
        $region43: #{surv_forward.1} parent=39 // pred_region
          %s245 = sand.u32 %s27, 1
          %s246 = scalar_lea.sflag [#allocation3], %s245
          %s247 = sand.u32 %s27, 1
          %s248 = smul.addr %s247, 768
          %s249 = scalar_lea.vmem [#allocation2], %s248
          %s251 = ssub.s32 12288, 12288
          %252 = vsyncadd %s246, %s251
          %s253 = smul.addr %s17, 192
          %s254 = smul.addr %s253, 64
          %s255 = scalar_lea.hbm %s0, %s254
          %s256 = sshll.u32 %s249, 4
          %s257 = int_to_ptr.vmem [resolvable:$true] %s256
          %262 = dma.hbm_to_vmem [thread:$0]  %s255, 12288, %s257, %s246, 192, 192, 12
        $region44: #{surv_forward.1} parent=39 // pred_fallthru
          _
      $region40: #{surv_forward.1} parent=5 // pred_fallthru
        _
      %p263 = scmp.le.s32.totalorder 1, %s17
      %p264 = scmp.lt.s32.totalorder %s17, 3
      %p265 = pnand %p263, %p264
      %p266 = pneg %p265
      // Predicated region
      $region45: #{surv_forward.1} parent=5 // pred_check
        _
      $region46: #{surv_forward.1} parent=5 // pred_check_branch
        %268 = sbr.rel (%p265) target = $region48
      $region47: #{surv_forward.1} parent=5 // pred_region
        %s269 = ssub.s32 %s17, 1
        %s270 = sand.u32 %s30, 1
        %s271 = scalar_lea.sflag [#allocation3], %s270
        %s272 = sand.u32 %s30, 1
        %s273 = smul.addr %s272, 768
        %s274 = scalar_lea.vmem [#allocation2], %s273
        // Predicated region
        $region49: #{surv_forward.1} parent=47 // pred_check
          %p275 = pneg %p43
        $region50: #{surv_forward.1} parent=47 // pred_check_branch
          %277 = sbr.rel (%p275) target = $region52
        $region51: #{surv_forward.1} parent=47 // pred_region
          %278 = dma.done %s271, 12288
        $region52: #{surv_forward.1} parent=47 // pred_fallthru
          _
        // Predicated region
        $region53: #{surv_forward.1} parent=47 // pred_check
          %p279 = pneg %p64
        $region54: #{surv_forward.1} parent=47 // pred_check_branch
          %281 = sbr.rel (%p279) target = $region56
        $region55: #{surv_forward.1} parent=47 // pred_region
          %282 = dma.done [#allocation5], 24576
        $region56: #{surv_forward.1} parent=47 // pred_fallthru
          _
        %s283 = sand.u32 %s30, 1
        %s284 = scalar_lea.sflag [#allocation3], %s283
        %s285 = sand.u32 %s30, 1
        %s286 = smul.addr %s285, 768
        %s287 = scalar_lea.vmem [#allocation2], %s286
        %p288 = pneg %p43
        %p289 = pneg %p40
        %p290 = pneg %p64
        %p291 = pneg %p61
        %p292 = pneg %p85
        %p293 = pneg %p82
        %p294 = pneg %p106
        %p295 = pneg %p103
        %p296 = pneg %p127
        %p297 = pneg %p124
        %p298 = pneg %p148
        %p299 = pneg %p145
        %p300 = pneg %p169
        %p301 = pneg %p166
        %p302 = pneg %p195
        %p303 = pneg %p192
        %p304 = scmp.lt.s32.totalorder %s22, 1
        %s305 = scalar_select %p304, %s22, 1
        %s306 = scalar_lea.vmem %s7, %s305
        %p307 = scmp.lt.s32.totalorder %s22, 1
        %s308 = scalar_select %p307, %s22, 1
        %s309 = scalar_lea.vmem %s7, %s308
        %s310 = smul.u32 0, 3
        %s311 = smul.addr %s310, 4
        %s312 = scalar_lea.vmem %s274, %s311 [#allocation2]
        %v313 = vld [vmem:[%s312] sm:$0xff]
        %v314 = vld [vmem:[%s312 + $0x8] sm:$0xf]
        %v315 = vld [vmem:[%s312 + $0xc] sm:$0xff]
        %v316 = vld [vmem:[%s312 + $0x14] sm:$0xf]
        %v317 = vld [vmem:[%s312 + $0x18] sm:$0xff]
        %v318 = vld [vmem:[%s312 + $0x20] sm:$0xf]
        %v319 = vld [vmem:[%s312 + $0x24] sm:$0xff]
        %v320 = vld [vmem:[%s312 + $0x2c] sm:$0xf]
        %v321 = vunpack.c.l.bf16 %v313
        %v322 = vunpack.c.h.bf16 %v313
        %v323 = vunpack.c.l.bf16 %v314
        %v324 = vunpack.c.l.bf16 %v315
        %v325 = vunpack.c.h.bf16 %v315
        %v326 = vunpack.c.l.bf16 %v316
        %v327 = vunpack.c.l.bf16 %v317
        %v328 = vunpack.c.h.bf16 %v317
        %v329 = vunpack.c.l.bf16 %v318
        %v330 = vunpack.c.l.bf16 %v319
        %v331 = vunpack.c.h.bf16 %v319
        %v332 = vunpack.c.l.bf16 %v320
        %v333 = vadd.f32 %v321, 0.0
        %v334 = vadd.f32 %v322, 0.0
        %v335 = vadd.f32 %v323, 0.0
        %v336 = vadd.f32 %v324, 0.0
        %v337 = vadd.f32 %v325, 0.0
        %v338 = vadd.f32 %v326, 0.0
        %v339 = vadd.f32 %v327, 0.0
        %v340 = vadd.f32 %v328, 0.0
        %v341 = vadd.f32 %v329, 0.0
        %v342 = vadd.f32 %v330, 0.0
        %v343 = vadd.f32 %v331, 0.0
        %v344 = vadd.f32 %v332, 0.0
        %s345 = smul.u32 4, 3
        %s346 = smul.addr %s345, 4
        %s347 = scalar_lea.vmem %s274, %s346 [#allocation2]
        %v348 = vld [vmem:[%s347] sm:$0xff]
        %v349 = vld [vmem:[%s347 + $0x8] sm:$0xf]
        %v350 = vld [vmem:[%s347 + $0xc] sm:$0xff]
        %v351 = vld [vmem:[%s347 + $0x14] sm:$0xf]
        %v352 = vld [vmem:[%s347 + $0x18] sm:$0xff]
        %v353 = vld [vmem:[%s347 + $0x20] sm:$0xf]
        %v354 = vld [vmem:[%s347 + $0x24] sm:$0xff]
        %v355 = vld [vmem:[%s347 + $0x2c] sm:$0xf]
        %v356 = vunpack.c.l.bf16 %v348
        %v357 = vunpack.c.h.bf16 %v348
        %v358 = vunpack.c.l.bf16 %v349
        %v359 = vunpack.c.l.bf16 %v350
        %v360 = vunpack.c.h.bf16 %v350
        %v361 = vunpack.c.l.bf16 %v351
        %v362 = vunpack.c.l.bf16 %v352
        %v363 = vunpack.c.h.bf16 %v352
        %v364 = vunpack.c.l.bf16 %v353
        %v365 = vunpack.c.l.bf16 %v354
        %v366 = vunpack.c.h.bf16 %v354
        %v367 = vunpack.c.l.bf16 %v355
        %v368 = vadd.f32 %v333, %v356
        %v369 = vadd.f32 %v334, %v357
        %v370 = vadd.f32 %v335, %v358
        %v371 = vadd.f32 %v336, %v359
        %v372 = vadd.f32 %v337, %v360
        %v373 = vadd.f32 %v338, %v361
        %v374 = vadd.f32 %v339, %v362
        %v375 = vadd.f32 %v340, %v363
        %v376 = vadd.f32 %v341, %v364
        %v377 = vadd.f32 %v342, %v365
        %v378 = vadd.f32 %v343, %v366
        %v379 = vadd.f32 %v344, %v367
        %v380 = vmax.f32 %v321, %v356
        %v381 = vmax.f32 %v322, %v357
        %v382 = vmax.f32 %v323, %v358
        %v383 = vmax.f32 %v324, %v359
        %v384 = vmax.f32 %v325, %v360
        %v385 = vmax.f32 %v326, %v361
        %v386 = vmax.f32 %v327, %v362
        %v387 = vmax.f32 %v328, %v363
        %v388 = vmax.f32 %v329, %v364
        %v389 = vmax.f32 %v330, %v365
        %v390 = vmax.f32 %v331, %v366
        %v391 = vmax.f32 %v332, %v367
        %s392 = smul.u32 8, 3
        %s393 = smul.addr %s392, 4
        %s394 = scalar_lea.vmem %s274, %s393 [#allocation2]
        %v395 = vld [vmem:[%s394] sm:$0xff]
        %v396 = vld [vmem:[%s394 + $0x8] sm:$0xf]
        %v397 = vld [vmem:[%s394 + $0xc] sm:$0xff]
        %v398 = vld [vmem:[%s394 + $0x14] sm:$0xf]
        %v399 = vld [vmem:[%s394 + $0x18] sm:$0xff]
        %v400 = vld [vmem:[%s394 + $0x20] sm:$0xf]
        %v401 = vld [vmem:[%s394 + $0x24] sm:$0xff]
        %v402 = vld [vmem:[%s394 + $0x2c] sm:$0xf]
        %v403 = vunpack.c.l.bf16 %v395
        %v404 = vunpack.c.h.bf16 %v395
        %v405 = vunpack.c.l.bf16 %v396
        %v406 = vunpack.c.l.bf16 %v397
        %v407 = vunpack.c.h.bf16 %v397
        %v408 = vunpack.c.l.bf16 %v398
        %v409 = vunpack.c.l.bf16 %v399
        %v410 = vunpack.c.h.bf16 %v399
        %v411 = vunpack.c.l.bf16 %v400
        %v412 = vunpack.c.l.bf16 %v401
        %v413 = vunpack.c.h.bf16 %v401
        %v414 = vunpack.c.l.bf16 %v402
        %v415 = vadd.f32 %v368, %v403
        %v416 = vadd.f32 %v369, %v404
        %v417 = vadd.f32 %v370, %v405
        %v418 = vadd.f32 %v371, %v406
        %v419 = vadd.f32 %v372, %v407
        %v420 = vadd.f32 %v373, %v408
        %v421 = vadd.f32 %v374, %v409
        %v422 = vadd.f32 %v375, %v410
        %v423 = vadd.f32 %v376, %v411
        %v424 = vadd.f32 %v377, %v412
        %v425 = vadd.f32 %v378, %v413
        %v426 = vadd.f32 %v379, %v414
        %v427 = vmax.f32 %v380, %v403
        %v428 = vmax.f32 %v381, %v404
        %v429 = vmax.f32 %v382, %v405
        %v430 = vmax.f32 %v383, %v406
        %v431 = vmax.f32 %v384, %v407
        %v432 = vmax.f32 %v385, %v408
        %v433 = vmax.f32 %v386, %v409
        %v434 = vmax.f32 %v387, %v410
        %v435 = vmax.f32 %v388, %v411
        %v436 = vmax.f32 %v389, %v412
        %v437 = vmax.f32 %v390, %v413
        %v438 = vmax.f32 %v391, %v414
        %s439 = smul.u32 12, 3
        %s440 = smul.addr %s439, 4
        %s441 = scalar_lea.vmem %s274, %s440 [#allocation2]
        %v442 = vld [vmem:[%s441] sm:$0xff]
        %v443 = vld [vmem:[%s441 + $0x8] sm:$0xf]
        %v444 = vld [vmem:[%s441 + $0xc] sm:$0xff]
        %v445 = vld [vmem:[%s441 + $0x14] sm:$0xf]
        %v446 = vld [vmem:[%s441 + $0x18] sm:$0xff]
        %v447 = vld [vmem:[%s441 + $0x20] sm:$0xf]
        %v448 = vld [vmem:[%s441 + $0x24] sm:$0xff]
        %v449 = vld [vmem:[%s441 + $0x2c] sm:$0xf]
        %v450 = vunpack.c.l.bf16 %v442
        %v451 = vunpack.c.h.bf16 %v442
        %v452 = vunpack.c.l.bf16 %v443
        %v453 = vunpack.c.l.bf16 %v444
        %v454 = vunpack.c.h.bf16 %v444
        %v455 = vunpack.c.l.bf16 %v445
        %v456 = vunpack.c.l.bf16 %v446
        %v457 = vunpack.c.h.bf16 %v446
        %v458 = vunpack.c.l.bf16 %v447
        %v459 = vunpack.c.l.bf16 %v448
        %v460 = vunpack.c.h.bf16 %v448
        %v461 = vunpack.c.l.bf16 %v449
        %v462 = vadd.f32 %v415, %v450
        %v463 = vadd.f32 %v416, %v451
        %v464 = vadd.f32 %v417, %v452
        %v465 = vadd.f32 %v418, %v453
        %v466 = vadd.f32 %v419, %v454
        %v467 = vadd.f32 %v420, %v455
        %v468 = vadd.f32 %v421, %v456
        %v469 = vadd.f32 %v422, %v457
        %v470 = vadd.f32 %v423, %v458
        %v471 = vadd.f32 %v424, %v459
        %v472 = vadd.f32 %v425, %v460
        %v473 = vadd.f32 %v426, %v461
        %v474 = vmax.f32 %v427, %v450
        %v475 = vmax.f32 %v428, %v451
        %v476 = vmax.f32 %v429, %v452
        %v477 = vmax.f32 %v430, %v453
        %v478 = vmax.f32 %v431, %v454
        %v479 = vmax.f32 %v432, %v455
        %v480 = vmax.f32 %v433, %v456
        %v481 = vmax.f32 %v434, %v457
        %v482 = vmax.f32 %v435, %v458
        %v483 = vmax.f32 %v436, %v459
        %v484 = vmax.f32 %v437, %v460
        %v485 = vmax.f32 %v438, %v461
        %s486 = smul.u32 16, 3
        %s487 = smul.addr %s486, 4
        %s488 = scalar_lea.vmem %s274, %s487 [#allocation2]
        %v489 = vld [vmem:[%s488] sm:$0xff]
        %v490 = vld [vmem:[%s488 + $0x8] sm:$0xf]
        %v491 = vld [vmem:[%s488 + $0xc] sm:$0xff]
        %v492 = vld [vmem:[%s488 + $0x14] sm:$0xf]
        %v493 = vld [vmem:[%s488 + $0x18] sm:$0xff]
        %v494 = vld [vmem:[%s488 + $0x20] sm:$0xf]
        %v495 = vld [vmem:[%s488 + $0x24] sm:$0xff]
        %v496 = vld [vmem:[%s488 + $0x2c] sm:$0xf]
        %v497 = vunpack.c.l.bf16 %v489
        %v498 = vunpack.c.h.bf16 %v489
        %v499 = vunpack.c.l.bf16 %v490
        %v500 = vunpack.c.l.bf16 %v491
        %v501 = vunpack.c.h.bf16 %v491
        %v502 = vunpack.c.l.bf16 %v492
        %v503 = vunpack.c.l.bf16 %v493
        %v504 = vunpack.c.h.bf16 %v493
        %v505 = vunpack.c.l.bf16 %v494
        %v506 = vunpack.c.l.bf16 %v495
        %v507 = vunpack.c.h.bf16 %v495
        %v508 = vunpack.c.l.bf16 %v496
        %v509 = vadd.f32 %v462, %v497
        %v510 = vadd.f32 %v463, %v498
        %v511 = vadd.f32 %v464, %v499
        %v512 = vadd.f32 %v465, %v500
        %v513 = vadd.f32 %v466, %v501
        %v514 = vadd.f32 %v467, %v502
        %v515 = vadd.f32 %v468, %v503
        %v516 = vadd.f32 %v469, %v504
        %v517 = vadd.f32 %v470, %v505
        %v518 = vadd.f32 %v471, %v506
        %v519 = vadd.f32 %v472, %v507
        %v520 = vadd.f32 %v473, %v508
        %v521 = vmax.f32 %v474, %v497
        %v522 = vmax.f32 %v475, %v498
        %v523 = vmax.f32 %v476, %v499
        %v524 = vmax.f32 %v477, %v500
        %v525 = vmax.f32 %v478, %v501
        %v526 = vmax.f32 %v479, %v502
        %v527 = vmax.f32 %v480, %v503
        %v528 = vmax.f32 %v481, %v504
        %v529 = vmax.f32 %v482, %v505
        %v530 = vmax.f32 %v483, %v506
        %v531 = vmax.f32 %v484, %v507
        %v532 = vmax.f32 %v485, %v508
        %s533 = smul.u32 20, 3
        %s534 = smul.addr %s533, 4
        %s535 = scalar_lea.vmem %s274, %s534 [#allocation2]
        %v536 = vld [vmem:[%s535] sm:$0xff]
        %v537 = vld [vmem:[%s535 + $0x8] sm:$0xf]
        %v538 = vld [vmem:[%s535 + $0xc] sm:$0xff]
        %v539 = vld [vmem:[%s535 + $0x14] sm:$0xf]
        %v540 = vld [vmem:[%s535 + $0x18] sm:$0xff]
        %v541 = vld [vmem:[%s535 + $0x20] sm:$0xf]
        %v542 = vld [vmem:[%s535 + $0x24] sm:$0xff]
        %v543 = vld [vmem:[%s535 + $0x2c] sm:$0xf]
        %v544 = vunpack.c.l.bf16 %v536
        %v545 = vunpack.c.h.bf16 %v536
        %v546 = vunpack.c.l.bf16 %v537
        %v547 = vunpack.c.l.bf16 %v538
        %v548 = vunpack.c.h.bf16 %v538
        %v549 = vunpack.c.l.bf16 %v539
        %v550 = vunpack.c.l.bf16 %v540
        %v551 = vunpack.c.h.bf16 %v540
        %v552 = vunpack.c.l.bf16 %v541
        %v553 = vunpack.c.l.bf16 %v542
        %v554 = vunpack.c.h.bf16 %v542
        %v555 = vunpack.c.l.bf16 %v543
        %v556 = vadd.f32 %v509, %v544
        %v557 = vadd.f32 %v510, %v545
        %v558 = vadd.f32 %v511, %v546
        %v559 = vadd.f32 %v512, %v547
        %v560 = vadd.f32 %v513, %v548
        %v561 = vadd.f32 %v514, %v549
        %v562 = vadd.f32 %v515, %v550
        %v563 = vadd.f32 %v516, %v551
        %v564 = vadd.f32 %v517, %v552
        %v565 = vadd.f32 %v518, %v553
        %v566 = vadd.f32 %v519, %v554
        %v567 = vadd.f32 %v520, %v555
        %v568 = vmax.f32 %v521, %v544
        %v569 = vmax.f32 %v522, %v545
        %v570 = vmax.f32 %v523, %v546
        %v571 = vmax.f32 %v524, %v547
        %v572 = vmax.f32 %v525, %v548
        %v573 = vmax.f32 %v526, %v549
        %v574 = vmax.f32 %v527, %v550
        %v575 = vmax.f32 %v528, %v551
        %v576 = vmax.f32 %v529, %v552
        %v577 = vmax.f32 %v530, %v553
        %v578 = vmax.f32 %v531, %v554
        %v579 = vmax.f32 %v532, %v555
        %s580 = smul.u32 24, 3
        %s581 = smul.addr %s580, 4
        %s582 = scalar_lea.vmem %s274, %s581 [#allocation2]
        %v583 = vld [vmem:[%s582] sm:$0xff]
        %v584 = vld [vmem:[%s582 + $0x8] sm:$0xf]
        %v585 = vld [vmem:[%s582 + $0xc] sm:$0xff]
        %v586 = vld [vmem:[%s582 + $0x14] sm:$0xf]
        %v587 = vld [vmem:[%s582 + $0x18] sm:$0xff]
        %v588 = vld [vmem:[%s582 + $0x20] sm:$0xf]
        %v589 = vld [vmem:[%s582 + $0x24] sm:$0xff]
        %v590 = vld [vmem:[%s582 + $0x2c] sm:$0xf]
        %v591 = vunpack.c.l.bf16 %v583
        %v592 = vunpack.c.h.bf16 %v583
        %v593 = vunpack.c.l.bf16 %v584
        %v594 = vunpack.c.l.bf16 %v585
        %v595 = vunpack.c.h.bf16 %v585
        %v596 = vunpack.c.l.bf16 %v586
        %v597 = vunpack.c.l.bf16 %v587
        %v598 = vunpack.c.h.bf16 %v587
        %v599 = vunpack.c.l.bf16 %v588
        %v600 = vunpack.c.l.bf16 %v589
        %v601 = vunpack.c.h.bf16 %v589
        %v602 = vunpack.c.l.bf16 %v590
        %v603 = vadd.f32 %v556, %v591
        %v604 = vadd.f32 %v557, %v592
        %v605 = vadd.f32 %v558, %v593
        %v606 = vadd.f32 %v559, %v594
        %v607 = vadd.f32 %v560, %v595
        %v608 = vadd.f32 %v561, %v596
        %v609 = vadd.f32 %v562, %v597
        %v610 = vadd.f32 %v563, %v598
        %v611 = vadd.f32 %v564, %v599
        %v612 = vadd.f32 %v565, %v600
        %v613 = vadd.f32 %v566, %v601
        %v614 = vadd.f32 %v567, %v602
        %v615 = vmax.f32 %v568, %v591
        %v616 = vmax.f32 %v569, %v592
        %v617 = vmax.f32 %v570, %v593
        %v618 = vmax.f32 %v571, %v594
        %v619 = vmax.f32 %v572, %v595
        %v620 = vmax.f32 %v573, %v596
        %v621 = vmax.f32 %v574, %v597
        %v622 = vmax.f32 %v575, %v598
        %v623 = vmax.f32 %v576, %v599
        %v624 = vmax.f32 %v577, %v600
        %v625 = vmax.f32 %v578, %v601
        %v626 = vmax.f32 %v579, %v602
        %s627 = smul.u32 28, 3
        %s628 = smul.addr %s627, 4
        %s629 = scalar_lea.vmem %s274, %s628 [#allocation2]
        %v630 = vld [vmem:[%s629] sm:$0xff]
        %v631 = vld [vmem:[%s629 + $0x8] sm:$0xf]
        %v632 = vld [vmem:[%s629 + $0xc] sm:$0xff]
        %v633 = vld [vmem:[%s629 + $0x14] sm:$0xf]
        %v634 = vld [vmem:[%s629 + $0x18] sm:$0xff]
        %v635 = vld [vmem:[%s629 + $0x20] sm:$0xf]
        %v636 = vld [vmem:[%s629 + $0x24] sm:$0xff]
        %v637 = vld [vmem:[%s629 + $0x2c] sm:$0xf]
        %v638 = vunpack.c.l.bf16 %v630
        %v639 = vunpack.c.h.bf16 %v630
        %v640 = vunpack.c.l.bf16 %v631
        %v641 = vunpack.c.l.bf16 %v632
        %v642 = vunpack.c.h.bf16 %v632
        %v643 = vunpack.c.l.bf16 %v633
        %v644 = vunpack.c.l.bf16 %v634
        %v645 = vunpack.c.h.bf16 %v634
        %v646 = vunpack.c.l.bf16 %v635
        %v647 = vunpack.c.l.bf16 %v636
        %v648 = vunpack.c.h.bf16 %v636
        %v649 = vunpack.c.l.bf16 %v637
        %v650 = vadd.f32 %v603, %v638
        %v651 = vadd.f32 %v604, %v639
        %v652 = vadd.f32 %v605, %v640
        %v653 = vadd.f32 %v606, %v641
        %v654 = vadd.f32 %v607, %v642
        %v655 = vadd.f32 %v608, %v643
        %v656 = vadd.f32 %v609, %v644
        %v657 = vadd.f32 %v610, %v645
        %v658 = vadd.f32 %v611, %v646
        %v659 = vadd.f32 %v612, %v647
        %v660 = vadd.f32 %v613, %v648
        %v661 = vadd.f32 %v614, %v649
        %v662 = vmax.f32 %v615, %v638
        %v663 = vmax.f32 %v616, %v639
        %v664 = vmax.f32 %v617, %v640
        %v665 = vmax.f32 %v618, %v641
        %v666 = vmax.f32 %v619, %v642
        %v667 = vmax.f32 %v620, %v643
        %v668 = vmax.f32 %v621, %v644
        %v669 = vmax.f32 %v622, %v645
        %v670 = vmax.f32 %v623, %v646
        %v671 = vmax.f32 %v624, %v647
        %v672 = vmax.f32 %v625, %v648
        %v673 = vmax.f32 %v626, %v649
        %s674 = smul.u32 32, 3
        %s675 = smul.addr %s674, 4
        %s676 = scalar_lea.vmem %s274, %s675 [#allocation2]
        %v677 = vld [vmem:[%s676] sm:$0xff]
        %v678 = vld [vmem:[%s676 + $0x8] sm:$0xf]
        %v679 = vld [vmem:[%s676 + $0xc] sm:$0xff]
        %v680 = vld [vmem:[%s676 + $0x14] sm:$0xf]
        %v681 = vld [vmem:[%s676 + $0x18] sm:$0xff]
        %v682 = vld [vmem:[%s676 + $0x20] sm:$0xf]
        %v683 = vld [vmem:[%s676 + $0x24] sm:$0xff]
        %v684 = vld [vmem:[%s676 + $0x2c] sm:$0xf]
        %v685 = vunpack.c.l.bf16 %v677
        %v686 = vunpack.c.h.bf16 %v677
        %v687 = vunpack.c.l.bf16 %v678
        %v688 = vunpack.c.l.bf16 %v679
        %v689 = vunpack.c.h.bf16 %v679
        %v690 = vunpack.c.l.bf16 %v680
        %v691 = vunpack.c.l.bf16 %v681
        %v692 = vunpack.c.h.bf16 %v681
        %v693 = vunpack.c.l.bf16 %v682
        %v694 = vunpack.c.l.bf16 %v683
        %v695 = vunpack.c.h.bf16 %v683
        %v696 = vunpack.c.l.bf16 %v684
        %v697 = vadd.f32 %v650, %v685
        %v698 = vadd.f32 %v651, %v686
        %v699 = vadd.f32 %v652, %v687
        %v700 = vadd.f32 %v653, %v688
        %v701 = vadd.f32 %v654, %v689
        %v702 = vadd.f32 %v655, %v690
        %v703 = vadd.f32 %v656, %v691
        %v704 = vadd.f32 %v657, %v692
        %v705 = vadd.f32 %v658, %v693
        %v706 = vadd.f32 %v659, %v694
        %v707 = vadd.f32 %v660, %v695
        %v708 = vadd.f32 %v661, %v696
        %v709 = vmax.f32 %v662, %v685
        %v710 = vmax.f32 %v663, %v686
        %v711 = vmax.f32 %v664, %v687
        %v712 = vmax.f32 %v665, %v688
        %v713 = vmax.f32 %v666, %v689
        %v714 = vmax.f32 %v667, %v690
        %v715 = vmax.f32 %v668, %v691
        %v716 = vmax.f32 %v669, %v692
        %v717 = vmax.f32 %v670, %v693
        %v718 = vmax.f32 %v671, %v694
        %v719 = vmax.f32 %v672, %v695
        %v720 = vmax.f32 %v673, %v696
        %s721 = smul.u32 36, 3
        %s722 = smul.addr %s721, 4
        %s723 = scalar_lea.vmem %s274, %s722 [#allocation2]
        %v724 = vld [vmem:[%s723] sm:$0xff]
        %v725 = vld [vmem:[%s723 + $0x8] sm:$0xf]
        %v726 = vld [vmem:[%s723 + $0xc] sm:$0xff]
        %v727 = vld [vmem:[%s723 + $0x14] sm:$0xf]
        %v728 = vld [vmem:[%s723 + $0x18] sm:$0xff]
        %v729 = vld [vmem:[%s723 + $0x20] sm:$0xf]
        %v730 = vld [vmem:[%s723 + $0x24] sm:$0xff]
        %v731 = vld [vmem:[%s723 + $0x2c] sm:$0xf]
        %v732 = vunpack.c.l.bf16 %v724
        %v733 = vunpack.c.h.bf16 %v724
        %v734 = vunpack.c.l.bf16 %v725
        %v735 = vunpack.c.l.bf16 %v726
        %v736 = vunpack.c.h.bf16 %v726
        %v737 = vunpack.c.l.bf16 %v727
        %v738 = vunpack.c.l.bf16 %v728
        %v739 = vunpack.c.h.bf16 %v728
        %v740 = vunpack.c.l.bf16 %v729
        %v741 = vunpack.c.l.bf16 %v730
        %v742 = vunpack.c.h.bf16 %v730
        %v743 = vunpack.c.l.bf16 %v731
        %v744 = vadd.f32 %v697, %v732
        %v745 = vadd.f32 %v698, %v733
        %v746 = vadd.f32 %v699, %v734
        %v747 = vadd.f32 %v700, %v735
        %v748 = vadd.f32 %v701, %v736
        %v749 = vadd.f32 %v702, %v737
        %v750 = vadd.f32 %v703, %v738
        %v751 = vadd.f32 %v704, %v739
        %v752 = vadd.f32 %v705, %v740
        %v753 = vadd.f32 %v706, %v741
        %v754 = vadd.f32 %v707, %v742
        %v755 = vadd.f32 %v708, %v743
        %v756 = vmax.f32 %v709, %v732
        %v757 = vmax.f32 %v710, %v733
        %v758 = vmax.f32 %v711, %v734
        %v759 = vmax.f32 %v712, %v735
        %v760 = vmax.f32 %v713, %v736
        %v761 = vmax.f32 %v714, %v737
        %v762 = vmax.f32 %v715, %v738
        %v763 = vmax.f32 %v716, %v739
        %v764 = vmax.f32 %v717, %v740
        %v765 = vmax.f32 %v718, %v741
        %v766 = vmax.f32 %v719, %v742
        %v767 = vmax.f32 %v720, %v743
        %s768 = smul.u32 40, 3
        %s769 = smul.addr %s768, 4
        %s770 = scalar_lea.vmem %s274, %s769 [#allocation2]
        %v771 = vld [vmem:[%s770] sm:$0xff]
        %v772 = vld [vmem:[%s770 + $0x8] sm:$0xf]
        %v773 = vld [vmem:[%s770 + $0xc] sm:$0xff]
        %v774 = vld [vmem:[%s770 + $0x14] sm:$0xf]
        %v775 = vld [vmem:[%s770 + $0x18] sm:$0xff]
        %v776 = vld [vmem:[%s770 + $0x20] sm:$0xf]
        %v777 = vld [vmem:[%s770 + $0x24] sm:$0xff]
        %v778 = vld [vmem:[%s770 + $0x2c] sm:$0xf]
        %v779 = vunpack.c.l.bf16 %v771
        %v780 = vunpack.c.h.bf16 %v771
        %v781 = vunpack.c.l.bf16 %v772
        %v782 = vunpack.c.l.bf16 %v773
        %v783 = vunpack.c.h.bf16 %v773
        %v784 = vunpack.c.l.bf16 %v774
        %v785 = vunpack.c.l.bf16 %v775
        %v786 = vunpack.c.h.bf16 %v775
        %v787 = vunpack.c.l.bf16 %v776
        %v788 = vunpack.c.l.bf16 %v777
        %v789 = vunpack.c.h.bf16 %v777
        %v790 = vunpack.c.l.bf16 %v778
        %v791 = vadd.f32 %v744, %v779
        %v792 = vadd.f32 %v745, %v780
        %v793 = vadd.f32 %v746, %v781
        %v794 = vadd.f32 %v747, %v782
        %v795 = vadd.f32 %v748, %v783
        %v796 = vadd.f32 %v749, %v784
        %v797 = vadd.f32 %v750, %v785
        %v798 = vadd.f32 %v751, %v786
        %v799 = vadd.f32 %v752, %v787
        %v800 = vadd.f32 %v753, %v788
        %v801 = vadd.f32 %v754, %v789
        %v802 = vadd.f32 %v755, %v790
        %v803 = vmax.f32 %v756, %v779
        %v804 = vmax.f32 %v757, %v780
        %v805 = vmax.f32 %v758, %v781
        %v806 = vmax.f32 %v759, %v782
        %v807 = vmax.f32 %v760, %v783
        %v808 = vmax.f32 %v761, %v784
        %v809 = vmax.f32 %v762, %v785
        %v810 = vmax.f32 %v763, %v786
        %v811 = vmax.f32 %v764, %v787
        %v812 = vmax.f32 %v765, %v788
        %v813 = vmax.f32 %v766, %v789
        %v814 = vmax.f32 %v767, %v790
        %s815 = smul.u32 44, 3
        %s816 = smul.addr %s815, 4
        %s817 = scalar_lea.vmem %s274, %s816 [#allocation2]
        %v818 = vld [vmem:[%s817] sm:$0xff]
        %v819 = vld [vmem:[%s817 + $0x8] sm:$0xf]
        %v820 = vld [vmem:[%s817 + $0xc] sm:$0xff]
        %v821 = vld [vmem:[%s817 + $0x14] sm:$0xf]
        %v822 = vld [vmem:[%s817 + $0x18] sm:$0xff]
        %v823 = vld [vmem:[%s817 + $0x20] sm:$0xf]
        %v824 = vld [vmem:[%s817 + $0x24] sm:$0xff]
        %v825 = vld [vmem:[%s817 + $0x2c] sm:$0xf]
        %v826 = vunpack.c.l.bf16 %v818
        %v827 = vunpack.c.h.bf16 %v818
        %v828 = vunpack.c.l.bf16 %v819
        %v829 = vunpack.c.l.bf16 %v820
        %v830 = vunpack.c.h.bf16 %v820
        %v831 = vunpack.c.l.bf16 %v821
        %v832 = vunpack.c.l.bf16 %v822
        %v833 = vunpack.c.h.bf16 %v822
        %v834 = vunpack.c.l.bf16 %v823
        %v835 = vunpack.c.l.bf16 %v824
        %v836 = vunpack.c.h.bf16 %v824
        %v837 = vunpack.c.l.bf16 %v825
        %v838 = vadd.f32 %v791, %v826
        %v839 = vadd.f32 %v792, %v827
        %v840 = vadd.f32 %v793, %v828
        %v841 = vadd.f32 %v794, %v829
        %v842 = vadd.f32 %v795, %v830
        %v843 = vadd.f32 %v796, %v831
        %v844 = vadd.f32 %v797, %v832
        %v845 = vadd.f32 %v798, %v833
        %v846 = vadd.f32 %v799, %v834
        %v847 = vadd.f32 %v800, %v835
        %v848 = vadd.f32 %v801, %v836
        %v849 = vadd.f32 %v802, %v837
        %v850 = vmax.f32 %v803, %v826
        %v851 = vmax.f32 %v804, %v827
        %v852 = vmax.f32 %v805, %v828
        %v853 = vmax.f32 %v806, %v829
        %v854 = vmax.f32 %v807, %v830
        %v855 = vmax.f32 %v808, %v831
        %v856 = vmax.f32 %v809, %v832
        %v857 = vmax.f32 %v810, %v833
        %v858 = vmax.f32 %v811, %v834
        %v859 = vmax.f32 %v812, %v835
        %v860 = vmax.f32 %v813, %v836
        %v861 = vmax.f32 %v814, %v837
        %s862 = smul.u32 48, 3
        %s863 = smul.addr %s862, 4
        %s864 = scalar_lea.vmem %s274, %s863 [#allocation2]
        %v865 = vld [vmem:[%s864] sm:$0xff]
        %v866 = vld [vmem:[%s864 + $0x8] sm:$0xf]
        %v867 = vld [vmem:[%s864 + $0xc] sm:$0xff]
        %v868 = vld [vmem:[%s864 + $0x14] sm:$0xf]
        %v869 = vld [vmem:[%s864 + $0x18] sm:$0xff]
        %v870 = vld [vmem:[%s864 + $0x20] sm:$0xf]
        %v871 = vld [vmem:[%s864 + $0x24] sm:$0xff]
        %v872 = vld [vmem:[%s864 + $0x2c] sm:$0xf]
        %v873 = vunpack.c.l.bf16 %v865
        %v874 = vunpack.c.h.bf16 %v865
        %v875 = vunpack.c.l.bf16 %v866
        %v876 = vunpack.c.l.bf16 %v867
        %v877 = vunpack.c.h.bf16 %v867
        %v878 = vunpack.c.l.bf16 %v868
        %v879 = vunpack.c.l.bf16 %v869
        %v880 = vunpack.c.h.bf16 %v869
        %v881 = vunpack.c.l.bf16 %v870
        %v882 = vunpack.c.l.bf16 %v871
        %v883 = vunpack.c.h.bf16 %v871
        %v884 = vunpack.c.l.bf16 %v872
        %v885 = vadd.f32 %v838, %v873
        %v886 = vadd.f32 %v839, %v874
        %v887 = vadd.f32 %v840, %v875
        %v888 = vadd.f32 %v841, %v876
        %v889 = vadd.f32 %v842, %v877
        %v890 = vadd.f32 %v843, %v878
        %v891 = vadd.f32 %v844, %v879
        %v892 = vadd.f32 %v845, %v880
        %v893 = vadd.f32 %v846, %v881
        %v894 = vadd.f32 %v847, %v882
        %v895 = vadd.f32 %v848, %v883
        %v896 = vadd.f32 %v849, %v884
        %v897 = vmax.f32 %v850, %v873
        %v898 = vmax.f32 %v851, %v874
        %v899 = vmax.f32 %v852, %v875
        %v900 = vmax.f32 %v853, %v876
        %v901 = vmax.f32 %v854, %v877
        %v902 = vmax.f32 %v855, %v878
        %v903 = vmax.f32 %v856, %v879
        %v904 = vmax.f32 %v857, %v880
        %v905 = vmax.f32 %v858, %v881
        %v906 = vmax.f32 %v859, %v882
        %v907 = vmax.f32 %v860, %v883
        %v908 = vmax.f32 %v861, %v884
        %s909 = smul.u32 52, 3
        %s910 = smul.addr %s909, 4
        %s911 = scalar_lea.vmem %s274, %s910 [#allocation2]
        %v912 = vld [vmem:[%s911] sm:$0xff]
        %v913 = vld [vmem:[%s911 + $0x8] sm:$0xf]
        %v914 = vld [vmem:[%s911 + $0xc] sm:$0xff]
        %v915 = vld [vmem:[%s911 + $0x14] sm:$0xf]
        %v916 = vld [vmem:[%s911 + $0x18] sm:$0xff]
        %v917 = vld [vmem:[%s911 + $0x20] sm:$0xf]
        %v918 = vld [vmem:[%s911 + $0x24] sm:$0xff]
        %v919 = vld [vmem:[%s911 + $0x2c] sm:$0xf]
        %v920 = vunpack.c.l.bf16 %v912
        %v921 = vunpack.c.h.bf16 %v912
        %v922 = vunpack.c.l.bf16 %v913
        %v923 = vunpack.c.l.bf16 %v914
        %v924 = vunpack.c.h.bf16 %v914
        %v925 = vunpack.c.l.bf16 %v915
        %v926 = vunpack.c.l.bf16 %v916
        %v927 = vunpack.c.h.bf16 %v916
        %v928 = vunpack.c.l.bf16 %v917
        %v929 = vunpack.c.l.bf16 %v918
        %v930 = vunpack.c.h.bf16 %v918
        %v931 = vunpack.c.l.bf16 %v919
        %v932 = vadd.f32 %v885, %v920
        %v933 = vadd.f32 %v886, %v921
        %v934 = vadd.f32 %v887, %v922
        %v935 = vadd.f32 %v888, %v923
        %v936 = vadd.f32 %v889, %v924
        %v937 = vadd.f32 %v890, %v925
        %v938 = vadd.f32 %v891, %v926
        %v939 = vadd.f32 %v892, %v927
        %v940 = vadd.f32 %v893, %v928
        %v941 = vadd.f32 %v894, %v929
        %v942 = vadd.f32 %v895, %v930
        %v943 = vadd.f32 %v896, %v931
        %v944 = vmax.f32 %v897, %v920
        %v945 = vmax.f32 %v898, %v921
        %v946 = vmax.f32 %v899, %v922
        %v947 = vmax.f32 %v900, %v923
        %v948 = vmax.f32 %v901, %v924
        %v949 = vmax.f32 %v902, %v925
        %v950 = vmax.f32 %v903, %v926
        %v951 = vmax.f32 %v904, %v927
        %v952 = vmax.f32 %v905, %v928
        %v953 = vmax.f32 %v906, %v929
        %v954 = vmax.f32 %v907, %v930
        %v955 = vmax.f32 %v908, %v931
        %s956 = smul.u32 56, 3
        %s957 = smul.addr %s956, 4
        %s958 = scalar_lea.vmem %s274, %s957 [#allocation2]
        %v959 = vld [vmem:[%s958] sm:$0xff]
        %v960 = vld [vmem:[%s958 + $0x8] sm:$0xf]
        %v961 = vld [vmem:[%s958 + $0xc] sm:$0xff]
        %v962 = vld [vmem:[%s958 + $0x14] sm:$0xf]
        %v963 = vld [vmem:[%s958 + $0x18] sm:$0xff]
        %v964 = vld [vmem:[%s958 + $0x20] sm:$0xf]
        %v965 = vld [vmem:[%s958 + $0x24] sm:$0xff]
        %v966 = vld [vmem:[%s958 + $0x2c] sm:$0xf]
        %v967 = vunpack.c.l.bf16 %v959
        %v968 = vunpack.c.h.bf16 %v959
        %v969 = vunpack.c.l.bf16 %v960
        %v970 = vunpack.c.l.bf16 %v961
        %v971 = vunpack.c.h.bf16 %v961
        %v972 = vunpack.c.l.bf16 %v962
        %v973 = vunpack.c.l.bf16 %v963
        %v974 = vunpack.c.h.bf16 %v963
        %v975 = vunpack.c.l.bf16 %v964
        %v976 = vunpack.c.l.bf16 %v965
        %v977 = vunpack.c.h.bf16 %v965
        %v978 = vunpack.c.l.bf16 %v966
        %v979 = vadd.f32 %v932, %v967
        %v980 = vadd.f32 %v933, %v968
        %v981 = vadd.f32 %v934, %v969
        %v982 = vadd.f32 %v935, %v970
        %v983 = vadd.f32 %v936, %v971
        %v984 = vadd.f32 %v937, %v972
        %v985 = vadd.f32 %v938, %v973
        %v986 = vadd.f32 %v939, %v974
        %v987 = vadd.f32 %v940, %v975
        %v988 = vadd.f32 %v941, %v976
        %v989 = vadd.f32 %v942, %v977
        %v990 = vadd.f32 %v943, %v978
        %v991 = vmax.f32 %v944, %v967
        %v992 = vmax.f32 %v945, %v968
        %v993 = vmax.f32 %v946, %v969
        %v994 = vmax.f32 %v947, %v970
        %v995 = vmax.f32 %v948, %v971
        %v996 = vmax.f32 %v949, %v972
        %v997 = vmax.f32 %v950, %v973
        %v998 = vmax.f32 %v951, %v974
        %v999 = vmax.f32 %v952, %v975
        %v1000 = vmax.f32 %v953, %v976
        %v1001 = vmax.f32 %v954, %v977
        %v1002 = vmax.f32 %v955, %v978
        %s1003 = smul.u32 60, 3
        %s1004 = smul.addr %s1003, 4
        %s1005 = scalar_lea.vmem %s274, %s1004 [#allocation2]
        %v1006 = vld [vmem:[%s1005] sm:$0xff]
        %v1007 = vld [vmem:[%s1005 + $0x8] sm:$0xf]
        %v1008 = vld [vmem:[%s1005 + $0xc] sm:$0xff]
        %v1009 = vld [vmem:[%s1005 + $0x14] sm:$0xf]
        %v1010 = vld [vmem:[%s1005 + $0x18] sm:$0xff]
        %v1011 = vld [vmem:[%s1005 + $0x20] sm:$0xf]
        %v1012 = vld [vmem:[%s1005 + $0x24] sm:$0xff]
        %v1013 = vld [vmem:[%s1005 + $0x2c] sm:$0xf]
        %v1014 = vunpack.c.l.bf16 %v1006
        %v1015 = vunpack.c.h.bf16 %v1006
        %v1016 = vunpack.c.l.bf16 %v1007
        %v1017 = vunpack.c.l.bf16 %v1008
        %v1018 = vunpack.c.h.bf16 %v1008
        %v1019 = vunpack.c.l.bf16 %v1009
        %v1020 = vunpack.c.l.bf16 %v1010
        %v1021 = vunpack.c.h.bf16 %v1010
        %v1022 = vunpack.c.l.bf16 %v1011
        %v1023 = vunpack.c.l.bf16 %v1012
        %v1024 = vunpack.c.h.bf16 %v1012
        %v1025 = vunpack.c.l.bf16 %v1013
        %v1026 = vadd.f32 %v979, %v1014
        %v1027 = vadd.f32 %v980, %v1015
        %v1028 = vadd.f32 %v981, %v1016
        %v1029 = vadd.f32 %v982, %v1017
        %v1030 = vadd.f32 %v983, %v1018
        %v1031 = vadd.f32 %v984, %v1019
        %v1032 = vadd.f32 %v985, %v1020
        %v1033 = vadd.f32 %v986, %v1021
        %v1034 = vadd.f32 %v987, %v1022
        %v1035 = vadd.f32 %v988, %v1023
        %v1036 = vadd.f32 %v989, %v1024
        %v1037 = vadd.f32 %v990, %v1025
        %v1038 = vmax.f32 %v991, %v1014
        %v1039 = vmax.f32 %v992, %v1015
        %v1040 = vmax.f32 %v993, %v1016
        %v1041 = vmax.f32 %v994, %v1017
        %v1042 = vmax.f32 %v995, %v1018
        %v1043 = vmax.f32 %v996, %v1019
        %v1044 = vmax.f32 %v997, %v1020
        %v1045 = vmax.f32 %v998, %v1021
        %v1046 = vmax.f32 %v999, %v1022
        %v1047 = vmax.f32 %v1000, %v1023
        %v1048 = vmax.f32 %v1001, %v1024
        %v1049 = vmax.f32 %v1002, %v1025
        %v1050 = vadd.f32 %v1026, %v1029
        %v1051 = vadd.f32 %v1050, %v1032
        %v1052 = vadd.f32 %v1051, %v1035
        %v1053 = vrot.slane %v1052, 4
        %v1054 = vadd.f32 %v1052, %v1053
        %v1055 = vrot.slane %v1054, 2
        %v1056 = vadd.f32 %v1054, %v1055
        %v1057 = vrot.slane %v1056, 1
        %v1058 = vadd.f32 %v1056, %v1057
        %v1059 = vadd.f32 %v1027, %v1030
        %v1060 = vadd.f32 %v1059, %v1033
        %v1061 = vadd.f32 %v1060, %v1036
        %v1062 = vrot.slane %v1061, 4
        %v1063 = vadd.f32 %v1061, %v1062
        %v1064 = vrot.slane %v1063, 2
        %v1065 = vadd.f32 %v1063, %v1064
        %v1066 = vrot.slane %v1065, 1
        %v1067 = vadd.f32 %v1065, %v1066
        %v1068 = vadd.f32 %v1028, %v1031
        %v1069 = vadd.f32 %v1068, %v1034
        %v1070 = vadd.f32 %v1069, %v1037
        %v1071 = vrot.slane %v1070, 4
        %v1072 = vadd.f32 %v1070, %v1071
        %v1073 = vrot.slane %v1072, 2
        %v1074 = vadd.f32 %v1072, %v1073
        %v1075 = vrot.slane %v1074, 1
        %v1076 = vadd.f32 %v1074, %v1075
        %v1077 = vmul.f32 %v1058, 0.001953125
        %v1078 = vmul.f32 %v1067, 0.001953125
        %v1079 = vmul.f32 %v1076, 0.001953125
        %v1080 = vmax.f32 %v1038, %v1044
        %v1081 = vmax.f32 %v1041, %v1047
        %v1082 = vmax.f32 %v1080, %v1081
        %v1083 = vrot.slane %v1082, 4
        %v1084 = vmax.f32 %v1082, %v1083
        %v1085 = vrot.slane %v1084, 2
        %v1086 = vmax.f32 %v1084, %v1085
        %v1087 = vrot.slane %v1086, 1
        %v1088 = vmax.f32 %v1086, %v1087
        %v1089 = vmax.f32 %v1039, %v1045
        %v1090 = vmax.f32 %v1042, %v1048
        %v1091 = vmax.f32 %v1089, %v1090
        %v1092 = vrot.slane %v1091, 4
        %v1093 = vmax.f32 %v1091, %v1092
        %v1094 = vrot.slane %v1093, 2
        %v1095 = vmax.f32 %v1093, %v1094
        %v1096 = vrot.slane %v1095, 1
        %v1097 = vmax.f32 %v1095, %v1096
        %v1098 = vmax.f32 %v1040, %v1046
        %v1099 = vmax.f32 %v1043, %v1049
        %v1100 = vmax.f32 %v1098, %v1099
        %v1101 = vrot.slane %v1100, 4
        %v1102 = vmax.f32 %v1100, %v1101
        %v1103 = vrot.slane %v1102, 2
        %v1104 = vmax.f32 %v1102, %v1103
        %v1105 = vrot.slane %v1104, 1
        %v1106 = vmax.f32 %v1104, %v1105
        %v1107 = vld [vmem:[#allocation4] sm:$0xff]
        %v1108 = vld [vmem:[#allocation4 + $0x8] sm:$0xff]
        %v1109 = vld [vmem:[#allocation4 + $0x10] sm:$0xff]
        %v1110 = vld [vmem:[#allocation4 + $0x18] sm:$0xff]
        %v1111 = vld [vmem:[#allocation4 + $0x20] sm:$0xff]
        %v1112 = vld [vmem:[#allocation4 + $0x28] sm:$0xff]
        %v1113 = vld [vmem:[#allocation4 + $0x30] sm:$0xff]
        %v1114 = vld [vmem:[#allocation4 + $0x38] sm:$0xff]
        %v1115 = vld [vmem:[#allocation4 + $0x40] sm:$0xff]
        %v1116 = vld [vmem:[#allocation4 + $0x48] sm:$0xff]
        %v1117 = vld [vmem:[#allocation4 + $0x50] sm:$0xff]
        %v1118 = vld [vmem:[#allocation4 + $0x58] sm:$0xff]
        %v1119 = vld [vmem:[#allocation4 + $0x60] sm:$0xff]
        %v1120 = vld [vmem:[#allocation4 + $0x68] sm:$0xff]
        %v1121 = vld [vmem:[#allocation4 + $0x70] sm:$0xff]
        %v1122 = vld [vmem:[#allocation4 + $0x78] sm:$0xff]
        %v1123 = vld [vmem:[#allocation4 + $0x80] sm:$0xff]
        %v1124 = vld [vmem:[#allocation4 + $0x88] sm:$0xff]
        %v1125 = vld [vmem:[#allocation4 + $0x90] sm:$0xff]
        %v1126 = vld [vmem:[#allocation4 + $0x98] sm:$0xff]
        %v1127 = vld [vmem:[#allocation4 + $0xa0] sm:$0xff]
        %v1128 = vld [vmem:[#allocation4 + $0xa8] sm:$0xff]
        %v1129 = vld [vmem:[#allocation4 + $0xb0] sm:$0xff]
        %v1130 = vld [vmem:[#allocation4 + $0xb8] sm:$0xff]
        %v1131 = vld [vmem:[#allocation4 + $0xc0] sm:$0xff]
        %v1132 = vld [vmem:[#allocation4 + $0xc8] sm:$0xff]
        %v1133 = vld [vmem:[#allocation4 + $0xd0] sm:$0xff]
        %v1134 = vld [vmem:[#allocation4 + $0xd8] sm:$0xff]
        %v1135 = vld [vmem:[#allocation4 + $0xe0] sm:$0xff]
        %v1136 = vld [vmem:[#allocation4 + $0xe8] sm:$0xff]
        %v1137 = vld [vmem:[#allocation4 + $0xf0] sm:$0xff]
        %v1138 = vld [vmem:[#allocation4 + $0xf8] sm:$0xff]
        %v1139 = vld [vmem:[#allocation4 + $0x100] sm:$0xff]
        %v1140 = vld [vmem:[#allocation4 + $0x108] sm:$0xff]
        %v1141 = vld [vmem:[#allocation4 + $0x110] sm:$0xff]
        %v1142 = vld [vmem:[#allocation4 + $0x118] sm:$0xff]
        %v1143 = vld [vmem:[#allocation4 + $0x120] sm:$0xff]
        %v1144 = vld [vmem:[#allocation4 + $0x128] sm:$0xff]
        %v1145 = vld [vmem:[#allocation4 + $0x130] sm:$0xff]
        %v1146 = vld [vmem:[#allocation4 + $0x138] sm:$0xff]
        %v1147 = vld [vmem:[#allocation4 + $0x140] sm:$0xff]
        %v1148 = vld [vmem:[#allocation4 + $0x148] sm:$0xff]
        %v1149 = vld [vmem:[#allocation4 + $0x150] sm:$0xff]
        %v1150 = vld [vmem:[#allocation4 + $0x158] sm:$0xff]
        %v1151 = vld [vmem:[#allocation4 + $0x160] sm:$0xff]
        %v1152 = vld [vmem:[#allocation4 + $0x168] sm:$0xff]
        %v1153 = vld [vmem:[#allocation4 + $0x170] sm:$0xff]
        %v1154 = vld [vmem:[#allocation4 + $0x178] sm:$0xff]
        %v1155 = vld [vmem:[#allocation4 + $0x180] sm:$0xff]
        %v1156 = vld [vmem:[#allocation4 + $0x188] sm:$0xff]
        %v1157 = vld [vmem:[#allocation4 + $0x190] sm:$0xff]
        %v1158 = vld [vmem:[#allocation4 + $0x198] sm:$0xff]
        %v1159 = vld [vmem:[#allocation4 + $0x1a0] sm:$0xff]
        %v1160 = vld [vmem:[#allocation4 + $0x1a8] sm:$0xff]
        %v1161 = vld [vmem:[#allocation4 + $0x1b0] sm:$0xff]
        %v1162 = vld [vmem:[#allocation4 + $0x1b8] sm:$0xff]
        %v1163 = vld [vmem:[#allocation4 + $0x1c0] sm:$0xff]
        %v1164 = vld [vmem:[#allocation4 + $0x1c8] sm:$0xff]
        %v1165 = vld [vmem:[#allocation4 + $0x1d0] sm:$0xff]
        %v1166 = vld [vmem:[#allocation4 + $0x1d8] sm:$0xff]
        %v1167 = vld [vmem:[#allocation4 + $0x1e0] sm:$0xff]
        %v1168 = vld [vmem:[#allocation4 + $0x1e8] sm:$0xff]
        %v1169 = vld [vmem:[#allocation4 + $0x1f0] sm:$0xff]
        %v1170 = vld [vmem:[#allocation4 + $0x1f8] sm:$0xff]
        %v1171 = vld [vmem:[#allocation4 + $0x200] sm:$0xff]
        %v1172 = vld [vmem:[#allocation4 + $0x208] sm:$0xff]
        %v1173 = vld [vmem:[#allocation4 + $0x210] sm:$0xff]
        %v1174 = vld [vmem:[#allocation4 + $0x218] sm:$0xff]
        %v1175 = vld [vmem:[#allocation4 + $0x220] sm:$0xff]
        %v1176 = vld [vmem:[#allocation4 + $0x228] sm:$0xff]
        %v1177 = vld [vmem:[#allocation4 + $0x230] sm:$0xff]
        %v1178 = vld [vmem:[#allocation4 + $0x238] sm:$0xff]
        %v1179 = vld [vmem:[#allocation4 + $0x240] sm:$0xff]
        %v1180 = vld [vmem:[#allocation4 + $0x248] sm:$0xff]
        %v1181 = vld [vmem:[#allocation4 + $0x250] sm:$0xff]
        %v1182 = vld [vmem:[#allocation4 + $0x258] sm:$0xff]
        %v1183 = vld [vmem:[#allocation4 + $0x260] sm:$0xff]
        %v1184 = vld [vmem:[#allocation4 + $0x268] sm:$0xff]
        %v1185 = vld [vmem:[#allocation4 + $0x270] sm:$0xff]
        %v1186 = vld [vmem:[#allocation4 + $0x278] sm:$0xff]
        %v1187 = vld [vmem:[#allocation4 + $0x280] sm:$0xff]
        %v1188 = vld [vmem:[#allocation4 + $0x288] sm:$0xff]
        %v1189 = vld [vmem:[#allocation4 + $0x290] sm:$0xff]
        %v1190 = vld [vmem:[#allocation4 + $0x298] sm:$0xff]
        %v1191 = vld [vmem:[#allocation4 + $0x2a0] sm:$0xff]
        %v1192 = vld [vmem:[#allocation4 + $0x2a8] sm:$0xff]
        %v1193 = vld [vmem:[#allocation4 + $0x2b0] sm:$0xff]
        %v1194 = vld [vmem:[#allocation4 + $0x2b8] sm:$0xff]
        %v1195 = vld [vmem:[#allocation4 + $0x2c0] sm:$0xff]
        %v1196 = vld [vmem:[#allocation4 + $0x2c8] sm:$0xff]
        %v1197 = vld [vmem:[#allocation4 + $0x2d0] sm:$0xff]
        %v1198 = vld [vmem:[#allocation4 + $0x2d8] sm:$0xff]
        %v1199 = vld [vmem:[#allocation4 + $0x2e0] sm:$0xff]
        %v1200 = vld [vmem:[#allocation4 + $0x2e8] sm:$0xff]
        %v1201 = vld [vmem:[#allocation4 + $0x2f0] sm:$0xff]
        %v1202 = vld [vmem:[#allocation4 + $0x2f8] sm:$0xff]
        %v1203 = vld [vmem:[#allocation4 + $0x300] sm:$0xff]
        %v1204 = vld [vmem:[#allocation4 + $0x308] sm:$0xff]
        %v1205 = vld [vmem:[#allocation4 + $0x310] sm:$0xff]
        %v1206 = vld [vmem:[#allocation4 + $0x318] sm:$0xff]
        %v1207 = vld [vmem:[#allocation4 + $0x320] sm:$0xff]
        %v1208 = vld [vmem:[#allocation4 + $0x328] sm:$0xff]
        %v1209 = vld [vmem:[#allocation4 + $0x330] sm:$0xff]
        %v1210 = vld [vmem:[#allocation4 + $0x338] sm:$0xff]
        %v1211 = vld [vmem:[#allocation4 + $0x340] sm:$0xff]
        %v1212 = vld [vmem:[#allocation4 + $0x348] sm:$0xff]
        %v1213 = vld [vmem:[#allocation4 + $0x350] sm:$0xff]
        %v1214 = vld [vmem:[#allocation4 + $0x358] sm:$0xff]
        %v1215 = vld [vmem:[#allocation4 + $0x360] sm:$0xff]
        %v1216 = vld [vmem:[#allocation4 + $0x368] sm:$0xff]
        %v1217 = vld [vmem:[#allocation4 + $0x370] sm:$0xff]
        %v1218 = vld [vmem:[#allocation4 + $0x378] sm:$0xff]
        %v1219 = vld [vmem:[#allocation4 + $0x380] sm:$0xff]
        %v1220 = vld [vmem:[#allocation4 + $0x388] sm:$0xff]
        %v1221 = vld [vmem:[#allocation4 + $0x390] sm:$0xff]
        %v1222 = vld [vmem:[#allocation4 + $0x398] sm:$0xff]
        %v1223 = vld [vmem:[#allocation4 + $0x3a0] sm:$0xff]
        %v1224 = vld [vmem:[#allocation4 + $0x3a8] sm:$0xff]
        %v1225 = vld [vmem:[#allocation4 + $0x3b0] sm:$0xff]
        %v1226 = vld [vmem:[#allocation4 + $0x3b8] sm:$0xff]
        %v1227 = vld [vmem:[#allocation4 + $0x3c0] sm:$0xff]
        %v1228 = vld [vmem:[#allocation4 + $0x3c8] sm:$0xff]
        %v1229 = vld [vmem:[#allocation4 + $0x3d0] sm:$0xff]
        %v1230 = vld [vmem:[#allocation4 + $0x3d8] sm:$0xff]
        %v1231 = vld [vmem:[#allocation4 + $0x3e0] sm:$0xff]
        %v1232 = vld [vmem:[#allocation4 + $0x3e8] sm:$0xff]
        %v1233 = vld [vmem:[#allocation4 + $0x3f0] sm:$0xff]
        %v1234 = vld [vmem:[#allocation4 + $0x3f8] sm:$0xff]
        %v1235 = vld [vmem:[#allocation4 + $0x400] sm:$0xff]
        %v1236 = vld [vmem:[#allocation4 + $0x408] sm:$0xff]
        %v1237 = vld [vmem:[#allocation4 + $0x410] sm:$0xff]
        %v1238 = vld [vmem:[#allocation4 + $0x418] sm:$0xff]
        %v1239 = vld [vmem:[#allocation4 + $0x420] sm:$0xff]
        %v1240 = vld [vmem:[#allocation4 + $0x428] sm:$0xff]
        %v1241 = vld [vmem:[#allocation4 + $0x430] sm:$0xff]
        %v1242 = vld [vmem:[#allocation4 + $0x438] sm:$0xff]
        %v1243 = vld [vmem:[#allocation4 + $0x440] sm:$0xff]
        %v1244 = vld [vmem:[#allocation4 + $0x448] sm:$0xff]
        %v1245 = vld [vmem:[#allocation4 + $0x450] sm:$0xff]
        %v1246 = vld [vmem:[#allocation4 + $0x458] sm:$0xff]
        %v1247 = vld [vmem:[#allocation4 + $0x460] sm:$0xff]
        %v1248 = vld [vmem:[#allocation4 + $0x468] sm:$0xff]
        %v1249 = vld [vmem:[#allocation4 + $0x470] sm:$0xff]
        %v1250 = vld [vmem:[#allocation4 + $0x478] sm:$0xff]
        %v1251 = vld [vmem:[#allocation4 + $0x480] sm:$0xff]
        %v1252 = vld [vmem:[#allocation4 + $0x488] sm:$0xff]
        %v1253 = vld [vmem:[#allocation4 + $0x490] sm:$0xff]
        %v1254 = vld [vmem:[#allocation4 + $0x498] sm:$0xff]
        %v1255 = vld [vmem:[#allocation4 + $0x4a0] sm:$0xff]
        %v1256 = vld [vmem:[#allocation4 + $0x4a8] sm:$0xff]
        %v1257 = vld [vmem:[#allocation4 + $0x4b0] sm:$0xff]
        %v1258 = vld [vmem:[#allocation4 + $0x4b8] sm:$0xff]
        %v1259 = vld [vmem:[#allocation4 + $0x4c0] sm:$0xff]
        %v1260 = vld [vmem:[#allocation4 + $0x4c8] sm:$0xff]
        %v1261 = vld [vmem:[#allocation4 + $0x4d0] sm:$0xff]
        %v1262 = vld [vmem:[#allocation4 + $0x4d8] sm:$0xff]
        %v1263 = vld [vmem:[#allocation4 + $0x4e0] sm:$0xff]
        %v1264 = vld [vmem:[#allocation4 + $0x4e8] sm:$0xff]
        %v1265 = vld [vmem:[#allocation4 + $0x4f0] sm:$0xff]
        %v1266 = vld [vmem:[#allocation4 + $0x4f8] sm:$0xff]
        %v1267 = vld [vmem:[#allocation4 + $0x500] sm:$0xff]
        %v1268 = vld [vmem:[#allocation4 + $0x508] sm:$0xff]
        %v1269 = vld [vmem:[#allocation4 + $0x510] sm:$0xff]
        %v1270 = vld [vmem:[#allocation4 + $0x518] sm:$0xff]
        %v1271 = vld [vmem:[#allocation4 + $0x520] sm:$0xff]
        %v1272 = vld [vmem:[#allocation4 + $0x528] sm:$0xff]
        %v1273 = vld [vmem:[#allocation4 + $0x530] sm:$0xff]
        %v1274 = vld [vmem:[#allocation4 + $0x538] sm:$0xff]
        %v1275 = vld [vmem:[#allocation4 + $0x540] sm:$0xff]
        %v1276 = vld [vmem:[#allocation4 + $0x548] sm:$0xff]
        %v1277 = vld [vmem:[#allocation4 + $0x550] sm:$0xff]
        %v1278 = vld [vmem:[#allocation4 + $0x558] sm:$0xff]
        %v1279 = vld [vmem:[#allocation4 + $0x560] sm:$0xff]
        %v1280 = vld [vmem:[#allocation4 + $0x568] sm:$0xff]
        %v1281 = vld [vmem:[#allocation4 + $0x570] sm:$0xff]
        %v1282 = vld [vmem:[#allocation4 + $0x578] sm:$0xff]
        %v1283 = vld [vmem:[#allocation4 + $0x580] sm:$0xff]
        %v1284 = vld [vmem:[#allocation4 + $0x588] sm:$0xff]
        %v1285 = vld [vmem:[#allocation4 + $0x590] sm:$0xff]
        %v1286 = vld [vmem:[#allocation4 + $0x598] sm:$0xff]
        %v1287 = vld [vmem:[#allocation4 + $0x5a0] sm:$0xff]
        %v1288 = vld [vmem:[#allocation4 + $0x5a8] sm:$0xff]
        %v1289 = vld [vmem:[#allocation4 + $0x5b0] sm:$0xff]
        %v1290 = vld [vmem:[#allocation4 + $0x5b8] sm:$0xff]
        %v1291 = vld [vmem:[#allocation4 + $0x5c0] sm:$0xff]
        %v1292 = vld [vmem:[#allocation4 + $0x5c8] sm:$0xff]
        %v1293 = vld [vmem:[#allocation4 + $0x5d0] sm:$0xff]
        %v1294 = vld [vmem:[#allocation4 + $0x5d8] sm:$0xff]
        %v1295 = vld [vmem:[#allocation4 + $0x5e0] sm:$0xff]
        %v1296 = vld [vmem:[#allocation4 + $0x5e8] sm:$0xff]
        %v1297 = vld [vmem:[#allocation4 + $0x5f0] sm:$0xff]
        %v1298 = vld [vmem:[#allocation4 + $0x5f8] sm:$0xff]
        %v1299 = vld [vmem:[%s2] sm:$0x3]
        %v1301 = vlaneseq
        %v1302 = vshrl.u32 %v1301, 7
        %v1303 = vsub.s32 0, %v1302
        %v1304 = vrot.slane %v1299, %v1303
        %v1305 = vlaneseq
        %v1306 = vshrl.u32 %v1305, 7
        %v1307 = vsub.s32 1, %v1306
        %v1308 = vrot.slane %v1299, %v1307
        %1311 = vmatprep.subr.mxu0 %v1138
        %1312 = vmatpush1.msra.mxu0 %v1137
        %1313 = vmatprep.subr.mxu0 %v1136
        %1314 = vmatpush1.msra.mxu0 %v1135
        %1315 = vmatprep.subr.mxu0 %v1134
        %1316 = vmatpush1.msra.mxu0 %v1133
        %1317 = vmatprep.subr.mxu0 %v1132
        %1318 = vmatpush1.msra.mxu0 %v1131
        %1319 = vmatprep.subr.mxu0 %v1130
        %1320 = vmatpush1.msra.mxu0 %v1129
        %1321 = vmatprep.subr.mxu0 %v1128
        %1322 = vmatpush1.msra.mxu0 %v1127
        %1323 = vmatprep.subr.mxu0 %v1126
        %1324 = vmatpush1.msra.mxu0 %v1125
        %1325 = vmatprep.subr.mxu0 %v1124
        %1326 = vmatpush1.msra.mxu0 %v1123
        %1327 = vmatprep.subr.mxu0 %v1122
        %1328 = vmatpush1.msra.mxu0 %v1121
        %1329 = vmatprep.subr.mxu0 %v1120
        %1330 = vmatpush1.msra.mxu0 %v1119
        %1331 = vmatprep.subr.mxu0 %v1118
        %1332 = vmatpush1.msra.mxu0 %v1117
        %1333 = vmatprep.subr.mxu0 %v1116
        %1334 = vmatpush1.msra.mxu0 %v1115
        %1335 = vmatprep.subr.mxu0 %v1114
        %1336 = vmatpush1.msra.mxu0 %v1113
        %1337 = vmatprep.subr.mxu0 %v1112
        %1338 = vmatpush1.msra.mxu0 %v1111
        %1339 = vmatprep.subr.mxu0 %v1110
        %1340 = vmatpush1.msra.mxu0 %v1109
        %1341 = vmatprep.subr.mxu0 %v1108
        %1342 = vmatpush1.msra.mxu0 %v1107
        %1343 = vmatprep.subr.mxu0 %v1170
        %1344 = vmatpush2.msra.mxu0 %v1169
        %1345 = vmatprep.subr.mxu0 %v1168
        %1346 = vmatpush2.msra.mxu0 %v1167
        %1347 = vmatprep.subr.mxu0 %v1166
        %1348 = vmatpush2.msra.mxu0 %v1165
        %1349 = vmatprep.subr.mxu0 %v1164
        %1350 = vmatpush2.msra.mxu0 %v1163
        %1351 = vmatprep.subr.mxu0 %v1162
        %1352 = vmatpush2.msra.mxu0 %v1161
        %1353 = vmatprep.subr.mxu0 %v1160
        %1354 = vmatpush2.msra.mxu0 %v1159
        %1355 = vmatprep.subr.mxu0 %v1158
        %1356 = vmatpush2.msra.mxu0 %v1157
        %1357 = vmatprep.subr.mxu0 %v1156
        %1358 = vmatpush2.msra.mxu0 %v1155
        %1359 = vmatprep.subr.mxu0 %v1154
        %1360 = vmatpush2.msra.mxu0 %v1153
        %1361 = vmatprep.subr.mxu0 %v1152
        %1362 = vmatpush2.msra.mxu0 %v1151
        %1363 = vmatprep.subr.mxu0 %v1150
        %1364 = vmatpush2.msra.mxu0 %v1149
        %1365 = vmatprep.subr.mxu0 %v1148
        %1366 = vmatpush2.msra.mxu0 %v1147
        %1367 = vmatprep.subr.mxu0 %v1146
        %1368 = vmatpush2.msra.mxu0 %v1145
        %1369 = vmatprep.subr.mxu0 %v1144
        %1370 = vmatpush2.msra.mxu0 %v1143
        %1371 = vmatprep.subr.mxu0 %v1142
        %1372 = vmatpush2.msra.mxu0 %v1141
        %1373 = vmatprep.subr.mxu0 %v1140
        %1374 = vmatpush2.msra.mxu0 %v1139
        %1375 = vmatprep.mubr.f32.mxu0 %v1078
        %1376 = vmatmul.mubr.f32.gmra.mxu0 %v1077
        %v1377 = vpop.f32.mrf.mxu0
        %v1378 = vadd.f32 %v1304, %v1377
        %v1379 = vpop.f32.mrf.mxu0
        %v1380 = vadd.f32 %v1308, %v1379
        %1381 = vdwg.mxu0
        %1382 = vmatprep.subr.mxu0 %v1202
        %1383 = vmatpush1.msra.mxu0 %v1201
        %1384 = vmatprep.subr.mxu0 %v1200
        %1385 = vmatpush1.msra.mxu0 %v1199
        %1386 = vmatprep.subr.mxu0 %v1198
        %1387 = vmatpush1.msra.mxu0 %v1197
        %1388 = vmatprep.subr.mxu0 %v1196
        %1389 = vmatpush1.msra.mxu0 %v1195
        %1390 = vmatprep.subr.mxu0 %v1194
        %1391 = vmatpush1.msra.mxu0 %v1193
        %1392 = vmatprep.subr.mxu0 %v1192
        %1393 = vmatpush1.msra.mxu0 %v1191
        %1394 = vmatprep.subr.mxu0 %v1190
        %1395 = vmatpush1.msra.mxu0 %v1189
        %1396 = vmatprep.subr.mxu0 %v1188
        %1397 = vmatpush1.msra.mxu0 %v1187
        %1398 = vmatprep.subr.mxu0 %v1186
        %1399 = vmatpush1.msra.mxu0 %v1185
        %1400 = vmatprep.subr.mxu0 %v1184
        %1401 = vmatpush1.msra.mxu0 %v1183
        %1402 = vmatprep.subr.mxu0 %v1182
        %1403 = vmatpush1.msra.mxu0 %v1181
        %1404 = vmatprep.subr.mxu0 %v1180
        %1405 = vmatpush1.msra.mxu0 %v1179
        %1406 = vmatprep.subr.mxu0 %v1178
        %1407 = vmatpush1.msra.mxu0 %v1177
        %1408 = vmatprep.subr.mxu0 %v1176
        %1409 = vmatpush1.msra.mxu0 %v1175
        %1410 = vmatprep.subr.mxu0 %v1174
        %1411 = vmatpush1.msra.mxu0 %v1173
        %1412 = vmatprep.subr.mxu0 %v1172
        %1413 = vmatpush1.msra.mxu0 %v1171
        %1414 = vmatprep.subr.mxu0 %v1234
        %1415 = vmatpush2.msra.mxu0 %v1233
        %1416 = vmatprep.subr.mxu0 %v1232
        %1417 = vmatpush2.msra.mxu0 %v1231
        %1418 = vmatprep.subr.mxu0 %v1230
        %1419 = vmatpush2.msra.mxu0 %v1229
        %1420 = vmatprep.subr.mxu0 %v1228
        %1421 = vmatpush2.msra.mxu0 %v1227
        %1422 = vmatprep.subr.mxu0 %v1226
        %1423 = vmatpush2.msra.mxu0 %v1225
        %1424 = vmatprep.subr.mxu0 %v1224
        %1425 = vmatpush2.msra.mxu0 %v1223
        %1426 = vmatprep.subr.mxu0 %v1222
        %1427 = vmatpush2.msra.mxu0 %v1221
        %1428 = vmatprep.subr.mxu0 %v1220
        %1429 = vmatpush2.msra.mxu0 %v1219
        %1430 = vmatprep.subr.mxu0 %v1218
        %1431 = vmatpush2.msra.mxu0 %v1217
        %1432 = vmatprep.subr.mxu0 %v1216
        %1433 = vmatpush2.msra.mxu0 %v1215
        %1434 = vmatprep.subr.mxu0 %v1214
        %1435 = vmatpush2.msra.mxu0 %v1213
        %1436 = vmatprep.subr.mxu0 %v1212
        %1437 = vmatpush2.msra.mxu0 %v1211
        %1438 = vmatprep.subr.mxu0 %v1210
        %1439 = vmatpush2.msra.mxu0 %v1209
        %1440 = vmatprep.subr.mxu0 %v1208
        %1441 = vmatpush2.msra.mxu0 %v1207
        %1442 = vmatprep.subr.mxu0 %v1206
        %1443 = vmatpush2.msra.mxu0 %v1205
        %1444 = vmatprep.subr.mxu0 %v1204
        %1445 = vmatpush2.msra.mxu0 %v1203
        %1446 = vmatprep.mubr.f32.mxu0 %v1088
        %1447 = vmatmul.mubr.f32.gmra.mxu0 %v1079
        %v1448 = vpop.f32.mrf.mxu0
        %v1449 = vadd.f32 %v1378, %v1448
        %v1450 = vpop.f32.mrf.mxu0
        %v1451 = vadd.f32 %v1380, %v1450
        %1452 = vdwg.mxu0
        %1453 = vmatprep.subr.mxu0 %v1266
        %1454 = vmatpush1.msra.mxu0 %v1265
        %1455 = vmatprep.subr.mxu0 %v1264
        %1456 = vmatpush1.msra.mxu0 %v1263
        %1457 = vmatprep.subr.mxu0 %v1262
        %1458 = vmatpush1.msra.mxu0 %v1261
        %1459 = vmatprep.subr.mxu0 %v1260
        %1460 = vmatpush1.msra.mxu0 %v1259
        %1461 = vmatprep.subr.mxu0 %v1258
        %1462 = vmatpush1.msra.mxu0 %v1257
        %1463 = vmatprep.subr.mxu0 %v1256
        %1464 = vmatpush1.msra.mxu0 %v1255
        %1465 = vmatprep.subr.mxu0 %v1254
        %1466 = vmatpush1.msra.mxu0 %v1253
        %1467 = vmatprep.subr.mxu0 %v1252
        %1468 = vmatpush1.msra.mxu0 %v1251
        %1469 = vmatprep.subr.mxu0 %v1250
        %1470 = vmatpush1.msra.mxu0 %v1249
        %1471 = vmatprep.subr.mxu0 %v1248
        %1472 = vmatpush1.msra.mxu0 %v1247
        %1473 = vmatprep.subr.mxu0 %v1246
        %1474 = vmatpush1.msra.mxu0 %v1245
        %1475 = vmatprep.subr.mxu0 %v1244
        %1476 = vmatpush1.msra.mxu0 %v1243
        %1477 = vmatprep.subr.mxu0 %v1242
        %1478 = vmatpush1.msra.mxu0 %v1241
        %1479 = vmatprep.subr.mxu0 %v1240
        %1480 = vmatpush1.msra.mxu0 %v1239
        %1481 = vmatprep.subr.mxu0 %v1238
        %1482 = vmatpush1.msra.mxu0 %v1237
        %1483 = vmatprep.subr.mxu0 %v1236
        %1484 = vmatpush1.msra.mxu0 %v1235
        %1485 = vmatprep.subr.mxu0 %v1298
        %1486 = vmatpush2.msra.mxu0 %v1297
        %1487 = vmatprep.subr.mxu0 %v1296
        %1488 = vmatpush2.msra.mxu0 %v1295
        %1489 = vmatprep.subr.mxu0 %v1294
        %1490 = vmatpush2.msra.mxu0 %v1293
        %1491 = vmatprep.subr.mxu0 %v1292
        %1492 = vmatpush2.msra.mxu0 %v1291
        %1493 = vmatprep.subr.mxu0 %v1290
        %1494 = vmatpush2.msra.mxu0 %v1289
        %1495 = vmatprep.subr.mxu0 %v1288
        %1496 = vmatpush2.msra.mxu0 %v1287
        %1497 = vmatprep.subr.mxu0 %v1286
        %1498 = vmatpush2.msra.mxu0 %v1285
        %1499 = vmatprep.subr.mxu0 %v1284
        %1500 = vmatpush2.msra.mxu0 %v1283
        %1501 = vmatprep.subr.mxu0 %v1282
        %1502 = vmatpush2.msra.mxu0 %v1281
        %1503 = vmatprep.subr.mxu0 %v1280
        %1504 = vmatpush2.msra.mxu0 %v1279
        %1505 = vmatprep.subr.mxu0 %v1278
        %1506 = vmatpush2.msra.mxu0 %v1277
        %1507 = vmatprep.subr.mxu0 %v1276
        %1508 = vmatpush2.msra.mxu0 %v1275
        %1509 = vmatprep.subr.mxu0 %v1274
        %1510 = vmatpush2.msra.mxu0 %v1273
        %1511 = vmatprep.subr.mxu0 %v1272
        %1512 = vmatpush2.msra.mxu0 %v1271
        %1513 = vmatprep.subr.mxu0 %v1270
        %1514 = vmatpush2.msra.mxu0 %v1269
        %1515 = vmatprep.subr.mxu0 %v1268
        %1516 = vmatpush2.msra.mxu0 %v1267
        %1517 = vmatprep.mubr.f32.mxu0 %v1106
        %1518 = vmatmul.mubr.f32.gmra.mxu0 %v1097
        %v1519 = vpop.f32.mrf.mxu0
        %v1520 = vadd.f32 %v1449, %v1519
        %v1521 = vpop.f32.mrf.mxu0
        %v1522 = vadd.f32 %v1451, %v1521
        %1523 = vdwg.mxu0
        %v1524 = vmax.f32 %v1520, 0.0
        %v1525 = vmax.f32 %v1522, 0.0
        %v1526 = vld [vmem:[%s3] sm:$0xff]
        %v1527 = vld [vmem:[%s3 + $0x8] sm:$0xff]
        %v1528 = vld [vmem:[%s3 + $0x10] sm:$0xff]
        %v1529 = vld [vmem:[%s3 + $0x18] sm:$0xff]
        %v1530 = vld [vmem:[%s3 + $0x20] sm:$0xff]
        %v1531 = vld [vmem:[%s3 + $0x28] sm:$0xff]
        %v1532 = vld [vmem:[%s3 + $0x30] sm:$0xff]
        %v1533 = vld [vmem:[%s3 + $0x38] sm:$0xff]
        %v1534 = vld [vmem:[%s3 + $0x40] sm:$0xff]
        %v1535 = vld [vmem:[%s3 + $0x48] sm:$0xff]
        %v1536 = vld [vmem:[%s3 + $0x50] sm:$0xff]
        %v1537 = vld [vmem:[%s3 + $0x58] sm:$0xff]
        %v1538 = vld [vmem:[%s3 + $0x60] sm:$0xff]
        %v1539 = vld [vmem:[%s3 + $0x68] sm:$0xff]
        %v1540 = vld [vmem:[%s3 + $0x70] sm:$0xff]
        %v1541 = vld [vmem:[%s3 + $0x78] sm:$0xff]
        %v1542 = vld [vmem:[%s3 + $0x80] sm:$0xff]
        %v1543 = vld [vmem:[%s3 + $0x88] sm:$0xff]
        %v1544 = vld [vmem:[%s3 + $0x90] sm:$0xff]
        %v1545 = vld [vmem:[%s3 + $0x98] sm:$0xff]
        %v1546 = vld [vmem:[%s3 + $0xa0] sm:$0xff]
        %v1547 = vld [vmem:[%s3 + $0xa8] sm:$0xff]
        %v1548 = vld [vmem:[%s3 + $0xb0] sm:$0xff]
        %v1549 = vld [vmem:[%s3 + $0xb8] sm:$0xff]
        %v1550 = vld [vmem:[%s3 + $0xc0] sm:$0xff]
        %v1551 = vld [vmem:[%s3 + $0xc8] sm:$0xff]
        %v1552 = vld [vmem:[%s3 + $0xd0] sm:$0xff]
        %v1553 = vld [vmem:[%s3 + $0xd8] sm:$0xff]
        %v1554 = vld [vmem:[%s3 + $0xe0] sm:$0xff]
        %v1555 = vld [vmem:[%s3 + $0xe8] sm:$0xff]
        %v1556 = vld [vmem:[%s3 + $0xf0] sm:$0xff]
        %v1557 = vld [vmem:[%s3 + $0xf8] sm:$0xff]
        %v1558 = vld [vmem:[%s4] sm:$0x1]
        %1559 = vmatprep.subr.mxu0 0.0
        %1560 = vmatpush1.msra.mxu0 %v1541
        %1561 = vmatprep.subr.mxu0 0.0
        %1562 = vmatpush1.msra.mxu0 %v1540
        %1563 = vmatprep.subr.mxu0 0.0
        %1564 = vmatpush1.msra.mxu0 %v1539
        %1565 = vmatprep.subr.mxu0 0.0
        %1566 = vmatpush1.msra.mxu0 %v1538
        %1567 = vmatprep.subr.mxu0 0.0
        %1568 = vmatpush1.msra.mxu0 %v1537
        %1569 = vmatprep.subr.mxu0 0.0
        %1570 = vmatpush1.msra.mxu0 %v1536
        %1571 = vmatprep.subr.mxu0 0.0
        %1572 = vmatpush1.msra.mxu0 %v1535
        %1573 = vmatprep.subr.mxu0 0.0
        %1574 = vmatpush1.msra.mxu0 %v1534
        %1575 = vmatprep.subr.mxu0 0.0
        %1576 = vmatpush1.msra.mxu0 %v1533
        %1577 = vmatprep.subr.mxu0 0.0
        %1578 = vmatpush1.msra.mxu0 %v1532
        %1579 = vmatprep.subr.mxu0 0.0
        %1580 = vmatpush1.msra.mxu0 %v1531
        %1581 = vmatprep.subr.mxu0 0.0
        %1582 = vmatpush1.msra.mxu0 %v1530
        %1583 = vmatprep.subr.mxu0 0.0
        %1584 = vmatpush1.msra.mxu0 %v1529
        %1585 = vmatprep.subr.mxu0 0.0
        %1586 = vmatpush1.msra.mxu0 %v1528
        %1587 = vmatprep.subr.mxu0 0.0
        %1588 = vmatpush1.msra.mxu0 %v1527
        %1589 = vmatprep.subr.mxu0 0.0
        %1590 = vmatpush1.msra.mxu0 %v1526
        %1591 = vmatprep.subr.mxu0 0.0
        %1592 = vmatpush2.msra.mxu0 %v1557
        %1593 = vmatprep.subr.mxu0 0.0
        %1594 = vmatpush2.msra.mxu0 %v1556
        %1595 = vmatprep.subr.mxu0 0.0
        %1596 = vmatpush2.msra.mxu0 %v1555
        %1597 = vmatprep.subr.mxu0 0.0
        %1598 = vmatpush2.msra.mxu0 %v1554
        %1599 = vmatprep.subr.mxu0 0.0
        %1600 = vmatpush2.msra.mxu0 %v1553
        %1601 = vmatprep.subr.mxu0 0.0
        %1602 = vmatpush2.msra.mxu0 %v1552
        %1603 = vmatprep.subr.mxu0 0.0
        %1604 = vmatpush2.msra.mxu0 %v1551
        %1605 = vmatprep.subr.mxu0 0.0
        %1606 = vmatpush2.msra.mxu0 %v1550
        %1607 = vmatprep.subr.mxu0 0.0
        %1608 = vmatpush2.msra.mxu0 %v1549
        %1609 = vmatprep.subr.mxu0 0.0
        %1610 = vmatpush2.msra.mxu0 %v1548
        %1611 = vmatprep.subr.mxu0 0.0
        %1612 = vmatpush2.msra.mxu0 %v1547
        %1613 = vmatprep.subr.mxu0 0.0
        %1614 = vmatpush2.msra.mxu0 %v1546
        %1615 = vmatprep.subr.mxu0 0.0
        %1616 = vmatpush2.msra.mxu0 %v1545
        %1617 = vmatprep.subr.mxu0 0.0
        %1618 = vmatpush2.msra.mxu0 %v1544
        %1619 = vmatprep.subr.mxu0 0.0
        %1620 = vmatpush2.msra.mxu0 %v1543
        %1621 = vmatprep.subr.mxu0 0.0
        %1622 = vmatpush2.msra.mxu0 %v1542
        %1623 = vmatprep.mubr.f32.mxu0 %v1525
        %1624 = vmatmul.mubr.f32.gmra.mxu0 %v1524
        %v1625 = vpop.f32.mrf.mxu0
        %v1626 = vadd.f32 %v1558, %v1625
        %v1627 = vpop.f32.mrf.mxu0
        %1628 = vdwg.mxu0
        %v1629 = vmax.f32 %v1626, 0.0
        %v1630 = vld [vmem:[%s5] sm:$0xff]
        %v1631 = vld [vmem:[%s5 + $0x8] sm:$0xff]
        %v1632 = vld [vmem:[%s5 + $0x10] sm:$0xff]
        %v1633 = vld [vmem:[%s5 + $0x18] sm:$0xff]
        %v1634 = vld [vmem:[%s5 + $0x20] sm:$0xff]
        %v1635 = vld [vmem:[%s5 + $0x28] sm:$0xff]
        %v1636 = vld [vmem:[%s5 + $0x30] sm:$0xff]
        %v1637 = vld [vmem:[%s5 + $0x38] sm:$0xff]
        %v1638 = vld [vmem:[%s6] sm:$0x1]
        %vm1639 = vcmask 523264
        %v1641 = vsel %vm1639, %v1629, 0
        %1643 = vmatprep.subr.mxu0 0.0
        %1644 = vmatpush1.msra.mxu0 0.0
        %1645 = vmatprep.subr.mxu0 0.0
        %1646 = vmatpush1.msra.mxu0 0.0
        %1647 = vmatprep.subr.mxu0 0.0
        %1648 = vmatpush1.msra.mxu0 0.0
        %1649 = vmatprep.subr.mxu0 0.0
        %1650 = vmatpush1.msra.mxu0 0.0
        %1651 = vmatprep.subr.mxu0 0.0
        %1652 = vmatpush1.msra.mxu0 0.0
        %1653 = vmatprep.subr.mxu0 0.0
        %1654 = vmatpush1.msra.mxu0 0.0
        %1655 = vmatprep.subr.mxu0 0.0
        %1656 = vmatpush1.msra.mxu0 0.0
        %1657 = vmatprep.subr.mxu0 0.0
        %1658 = vmatpush1.msra.mxu0 0.0
        %1659 = vmatprep.subr.mxu0 0.0
        %1660 = vmatpush1.msra.mxu0 %v1637
        %1661 = vmatprep.subr.mxu0 0.0
        %1662 = vmatpush1.msra.mxu0 %v1636
        %1663 = vmatprep.subr.mxu0 0.0
        %1664 = vmatpush1.msra.mxu0 %v1635
        %1665 = vmatprep.subr.mxu0 0.0
        %1666 = vmatpush1.msra.mxu0 %v1634
        %1667 = vmatprep.subr.mxu0 0.0
        %1668 = vmatpush1.msra.mxu0 %v1633
        %1669 = vmatprep.subr.mxu0 0.0
        %1670 = vmatpush1.msra.mxu0 %v1632
        %1671 = vmatprep.subr.mxu0 0.0
        %1672 = vmatpush1.msra.mxu0 %v1631
        %1673 = vmatprep.subr.mxu0 0.0
        %1674 = vmatpush1.msra.mxu0 %v1630
        %1675 = vmatprep.subr.mxu0 0.0
        %1676 = vmatpush2.msra.mxu0 0.0
        %1677 = vmatprep.subr.mxu0 0.0
        %1678 = vmatpush2.msra.mxu0 0.0
        %1679 = vmatprep.subr.mxu0 0.0
        %1680 = vmatpush2.msra.mxu0 0.0
        %1681 = vmatprep.subr.mxu0 0.0
        %1682 = vmatpush2.msra.mxu0 0.0
        %1683 = vmatprep.subr.mxu0 0.0
        %1684 = vmatpush2.msra.mxu0 0.0
        %1685 = vmatprep.subr.mxu0 0.0
        %1686 = vmatpush2.msra.mxu0 0.0
        %1687 = vmatprep.subr.mxu0 0.0
        %1688 = vmatpush2.msra.mxu0 0.0
        %1689 = vmatprep.subr.mxu0 0.0
        %1690 = vmatpush2.msra.mxu0 0.0
        %1691 = vmatprep.subr.mxu0 0.0
        %1692 = vmatpush2.msra.mxu0 0.0
        %1693 = vmatprep.subr.mxu0 0.0
        %1694 = vmatpush2.msra.mxu0 0.0
        %1695 = vmatprep.subr.mxu0 0.0
        %1696 = vmatpush2.msra.mxu0 0.0
        %1697 = vmatprep.subr.mxu0 0.0
        %1698 = vmatpush2.msra.mxu0 0.0
        %1699 = vmatprep.subr.mxu0 0.0
        %1700 = vmatpush2.msra.mxu0 0.0
        %1701 = vmatprep.subr.mxu0 0.0
        %1702 = vmatpush2.msra.mxu0 0.0
        %1703 = vmatprep.subr.mxu0 0.0
        %1704 = vmatpush2.msra.mxu0 0.0
        %1705 = vmatprep.subr.mxu0 0.0
        %1706 = vmatpush2.msra.mxu0 0.0
        %1707 = vmatprep.mubr.f32.mxu0 0.0
        %1708 = vmatmul.mubr.f32.gmra.mxu0 %v1641
        %v1709 = vpop.f32.mrf.mxu0
        %v1710 = vadd.f32 %v1638, %v1709
        %v1711 = vpop.f32.mrf.mxu0
        %1712 = vdwg.mxu0
        %v1713 = vxor.u32 %v1710, 2147483648
        %v1714 = vmul.f32 %v1713, 1.442695
        %v1715 = vpow.pop %v1714
        %v1716 = vadd.f32 %v1715, 1.0
        %v1717 = vrcp.pop %v1716
        %v1718 = vmul.f32 1.0, %v1717
        %v1719 = vsub.f32 1.0, %v1718
        %1721 = vrot.lane.b32.xlu0 %v1719, 127
        %v1722 = vpop.permute.xlu0 %1721
        %v1724 = vmul.f32 %v1719, %v1722
        %1725 = vrot.lane.b32.xlu0 %v1719, 126
        %v1726 = vpop.permute.xlu0 %1725
        %v1728 = vmul.f32 %v1724, %v1726
        %1729 = vrot.lane.b32.xlu0 %v1719, 125
        %v1730 = vpop.permute.xlu0 %1729
        %v1732 = vmul.f32 %v1728, %v1730
        %1734 = vrot.lane.b32.xlu0 %v1724, 1
        %v1735 = vpop.permute.xlu0 %1734
        %1738 = vrot.lane.b32.xlu0 %v1728, 2
        %v1739 = vpop.permute.xlu0 %1738
        %1742 = vrot.lane.b32.xlu0 %v1732, 3
        %v1743 = vpop.permute.xlu0 %1742
        %vm1745 = vcmask 7168
        %v1746 = vsel %vm1745, %v1719, %v1735
        %vm1747 = vcmask 15360
        %v1748 = vsel %vm1747, %v1746, %v1739
        %vm1749 = vcmask 23552
        %v1750 = vsel %vm1749, %v1748, %v1743
        %vm1751 = vcmask 1040384
        %v1752 = vsel %vm1751, %v1710, -inf
        %1753 = vmax.xlane.f32.xlu0 %v1752
        %v1754 = vpop.xlane.xlu0 %1753
        %v1755 = vlaneseq
        %v1756 = vand.u32 %v1755, 127
        %vm1757 = vcmp.eq.f32.partialorder %v1710, %v1754
        %v1758 = vsel %vm1757, %v1756, 1073741824
        %v1759 = vsel %vm1751, %v1758, 2147483647
        %v1760 = vand.u32 %v1759, 65535
        %v1761 = vshra.s32 %v1759, 16
        %v1762 = vcvt.s32.f32 %v1760
        %v1763 = vcvt.s32.f32 %v1761
        %1764 = vmin.xlane.f32.xlu0 %v1763
        %v1765 = vpop.xlane.xlu0 %1764
        %vm1766 = vcmp.eq.f32.partialorder %v1763, %v1765
        %v1767 = vsel %vm1766, %v1762, inf
        %1768 = vmin.xlane.f32.xlu0 %v1767
        %v1769 = vpop.xlane.xlu0 %1768
        %v1770 = vcvt.f32.s32 %v1769
        %v1771 = vcvt.f32.s32 %v1765
        %v1772 = vshll.u32 %v1771, 16
        %v1773 = vadd.s32 %v1772, %v1770
        %v1774 = vcvt.s32.f32 %v1773
        %1776 = vrot.lane.b32.xlu0 %v1750, 4
        %v1777 = vpop.permute.xlu0 %1776
        %vm1779 = vcmask 31744
        %v1780 = vsel %vm1779, %v1718, %v1777
        %vm1781 = vcmask 64512
        %v1782 = vsel %vm1781, %v1780, %v1774
        %vm1783 = vcmask 72704
        %v1784 = vsel %vm1783, %v1782, 0.0
        %1785 = vst [vmem:[%s309] sm:$0x1] %v1784
        %p1786 = scmp.lt.s32.totalorder %s22, 1
        %s1787 = scalar_select %p1786, %s22, 1
        %s1788 = scalar_lea.vmem %s7, %s1787
        // Predicated region
        $region57: #{surv_forward.1} parent=47 // pred_check
          %p1789 = pneg %p192
        $region58: #{surv_forward.1} parent=47 // pred_check_branch
          %1791 = sbr.rel (%p1789) target = $region60
        $region59: #{surv_forward.1} parent=47 // pred_region
          _
        $region60: #{surv_forward.1} parent=47 // pred_fallthru
          _
      $region48: #{surv_forward.1} parent=5 // pred_fallthru
        _
      %p1792 = scmp.le.s32.totalorder 2, %s17
      // Predicated region
      $region61: #{surv_forward.1} parent=5 // pred_check
        %p1793 = pneg %p1792
      $region62: #{surv_forward.1} parent=5 // pred_check_branch
        %1795 = sbr.rel (%p1793) target = $region64
      $region63: #{surv_forward.1} parent=5 // pred_region
        %s1796 = ssub.s32 %s17, 2
        // Predicated region
        $region65: #{surv_forward.1} parent=63 // pred_check
          %p1797 = pneg %p198
        $region66: #{surv_forward.1} parent=63 // pred_check_branch
          %1799 = sbr.rel (%p1797) target = $region68
        $region67: #{surv_forward.1} parent=63 // pred_region
          %p1800 = scmp.lt.s32.totalorder %s23, 1
          %s1801 = scalar_select %p1800, %s23, 1
          %s1802 = scalar_lea.vmem %s7, %s1801
        $region68: #{surv_forward.1} parent=63 // pred_fallthru
          _
      $region64: #{surv_forward.1} parent=5 // pred_fallthru
        _
    $region6: #{surv_forward.1} parent=1 // loop_footer
      %s21 = sadd.s32 1, %s17
    $region7: #{surv_forward.1} parent=1 // loop_footer_branch
      %16 = sbr.rel target = $region3
    $region8: #{surv_forward.1} parent=1 // loop_exit
      _
    %1803 = vsyncpa [#allocation3], 1
    %s1804 = scalar_lea.sflag [#allocation3], 1
    %1805 = vsyncpa %s1804, 1
    %1806 = vsyncpa [#allocation5], 1

</llo_original>
